<compile_context>
chip_gen: v5e
topology: v5e:2x2
jax: 0.10.0
libtpu: 0.0.40
codegen_flags: <defaults>
</compile_context>

<pallas_src>
import functools

import jax
import jax.numpy as jnp
import numpy as np
from jax.experimental import pallas as pl
from jax.experimental.pallas import tpu as pltpu


def forget_gru_kernel(gi0_ref, ge_ref, wi_ref, bi_ref, wh_ref,
                      out_ref, hfin_ref, h_scr, *, num_layers, tt):
    """One grid step == `tt` consecutive timesteps of the recurrence.

    gi0_ref : (tt, 3, B, H)  precomputed layer-0 input gates (bias included)
    ge_ref  : (L, B, H)      precomputed extra-input projection (per layer)
    wi_ref  : (L, 3, D, H)   input weights  (only layers >= 1 used in-kernel)
    bi_ref  : (L, 3, 1, H)   input biases   (only layers >= 1 used in-kernel)
    wh_ref  : (L, 3, H, H)   hidden weights
    out_ref : (tt, B, H)     time-major outputs for this time block
    hfin_ref: (L, B, H)      final hidden state (written on last grid step)
    h_scr   : (L, B, H) f32  hidden state, persistent across grid steps
    """
    tb = pl.program_id(0)

    @pl.when(tb == 0)
    def _init():
        h_scr[...] = jnp.zeros_like(h_scr)

    # Hoist all time-invariant loads out of the per-timestep loop.
    ge = [ge_ref[l] for l in range(num_layers)]                          # (B, H)
    wh = [[wh_ref[l, g] for g in range(3)] for l in range(num_layers)]   # (H, H)
    wi = [[wi_ref[l, g] for g in range(3)] for l in range(1, num_layers)]
    bi = [[bi_ref[l, g] for g in range(3)] for l in range(1, num_layers)]

    hs = [h_scr[l] for l in range(num_layers)]                           # (B, H) f32

    for s in range(tt):                  # static unroll, tt is small
        x_t = None
        for l in range(num_layers):
            h = hs[l]
            if l == 0:
                # Layer-0 input projection was precomputed outside the kernel.
                gi_r = gi0_ref[s, 0]
                gi_z = gi0_ref[s, 1]
                gi_n = gi0_ref[s, 2]
            else:
                gi_r = jnp.dot(x_t, wi[l - 1][0],
                               preferred_element_type=jnp.float32) + bi[l - 1][0]
                gi_z = jnp.dot(x_t, wi[l - 1][1],
                               preferred_element_type=jnp.float32) + bi[l - 1][1]
                gi_n = jnp.dot(x_t, wi[l - 1][2],
                               preferred_element_type=jnp.float32) + bi[l - 1][2]

            gh_r = jnp.dot(h, wh[l][0], preferred_element_type=jnp.float32)
            gh_z = jnp.dot(h, wh[l][1], preferred_element_type=jnp.float32)
            gh_n = jnp.dot(h, wh[l][2], preferred_element_type=jnp.float32)

            r = jax.nn.sigmoid(gi_r + gh_r + ge[l])
            z = jax.nn.sigmoid(gi_z + gh_z)
            n = jnp.tanh(gi_n + r * gh_n)
            h_new = (1.0 - z) * n + z * h

            hs[l] = h_new
            x_t = h_new

        out_ref[s] = x_t.astype(out_ref.dtype)

    # Persist hidden state for the next time block.
    for l in range(num_layers):
        h_scr[l] = hs[l]

    # Only write the final state once, on the last grid step.
    @pl.when(tb == pl.num_programs(0) - 1)
    def _final():
        for l in range(num_layers):
            hfin_ref[l] = hs[l].astype(hfin_ref.dtype)


def forget_gru(x, extra_input, params, *, num_layers, hidden_size, block_t=8):
    """x: (B, T, D), extra_input: (B, E). Returns (outputs (B, T, H),
    h_final (L, B, H)) — h_final is the stacked version of PyTorch's list."""
    wi, bi, wh, we = params  # (L,3,D,H), (L,3,1,H), (L,3,H,H), (L,E,H)
    B, T, D = x.shape
    H = hidden_size
    L = num_layers

    # Pad batch to a multiple of 8 (sublane granularity).
    B_pad = ((B + 7) // 8) * 8
    if B_pad != B:
        x_p = jnp.pad(x, ((0, B_pad - B), (0, 0), (0, 0)))
        e_p = jnp.pad(extra_input, ((0, B_pad - B), (0, 0)))
    else:
        x_p, e_p = x, extra_input

    # Time tile: largest divisor of T not exceeding block_t.
    tt = max(d for d in range(1, min(block_t, T) + 1) if T % d == 0)
    grid_t = T // tt

    # Time-invariant projections, hoisted out of the sequential recurrence and
    # run once as large batched matmuls (full MXU efficiency in XLA).
    ge = jnp.einsum('be,leh->lbh', e_p, we,
                    preferred_element_type=jnp.float32)            # (L, B_pad, H)
    gi0 = (jnp.einsum('btd,gdh->tgbh', x_p, wi[0],
                      preferred_element_type=jnp.float32)
           + bi[0][None, :, :, :])                                 # (T, 3, B_pad, H)

    kernel = functools.partial(forget_gru_kernel, num_layers=L, tt=tt)

    out_tm, h_fin = pl.pallas_call(
        kernel,
        out_shape=(jax.ShapeDtypeStruct((T, B_pad, H), x.dtype),
                   jax.ShapeDtypeStruct((L, B_pad, H), x.dtype)),
        grid_spec=pltpu.PrefetchScalarGridSpec(
            num_scalar_prefetch=0,
            grid=(grid_t,),
            in_specs=[
                pl.BlockSpec((tt, 3, B_pad, H), lambda t: (t, 0, 0, 0)),  # gi0
                pl.BlockSpec((L, B_pad, H), lambda t: (0, 0, 0)),         # ge
                pl.BlockSpec((L, 3, D, H), lambda t: (0, 0, 0, 0)),       # W_i (l>=1)
                pl.BlockSpec((L, 3, 1, H), lambda t: (0, 0, 0, 0)),       # b_i (l>=1)
                pl.BlockSpec((L, 3, H, H), lambda t: (0, 0, 0, 0)),       # W_h
            ],
            out_specs=[
                pl.BlockSpec((tt, B_pad, H), lambda t: (t, 0, 0)),        # outputs
                pl.BlockSpec((L, B_pad, H), lambda t: (0, 0, 0)),         # final h
            ],
            scratch_shapes=[pltpu.VMEM((L, B_pad, H), jnp.float32)],
        ),
        compiler_params=pltpu.CompilerParams(
            dimension_semantics=("arbitrary",)),   # sequential recurrence
    )(gi0, ge, wi, bi, wh)

    outputs = jnp.transpose(out_tm, (1, 0, 2))[:B]   # back to (B, T, H)
    return outputs, h_fin[:, :B]


def forget_gru_ref(x, extra_input, params, *, num_layers, hidden_size):
    """Pure-JAX reference mirroring the PyTorch forward exactly."""
    wi, bi, wh, we = params
    B, T, _ = x.shape
    h = [jnp.zeros((B, hidden_size), jnp.float32) for _ in range(num_layers)]
    outs = []
    for t in range(T):
        x_t = x[:, t, :]
        for l in range(num_layers):
            r = jax.nn.sigmoid(x_t @ wi[l, 0] + bi[l, 0]
                               + h[l] @ wh[l, 0] + extra_input @ we[l])
            z = jax.nn.sigmoid(x_t @ wi[l, 1] + bi[l, 1] + h[l] @ wh[l, 1])
            n = jnp.tanh(x_t @ wi[l, 2] + bi[l, 2] + r * (h[l] @ wh[l, 2]))
            h[l] = (1.0 - z) * n + z * h[l]
            x_t = h[l]
        outs.append(x_t[:, None, :])
    return jnp.concatenate(outs, axis=1), jnp.stack(h, axis=0)


def init_params(key, *, input_size, hidden_size, extra_input_size, num_layers):
    """Deterministic synthetic parameters, per-gate layout (in, out) = W.T,
    gate order [r, z, n]."""
    D, H, E, L = input_size, hidden_size, extra_input_size, num_layers
    ks = jax.random.split(key, 4)
    scale = 0.2
    wi = scale * jax.random.normal(ks[0], (L, 3, D, H), jnp.float32)
    bi = scale * jax.random.normal(ks[1], (L, 3, 1, H), jnp.float32)
    wh = scale * jax.random.normal(ks[2], (L, 3, H, H), jnp.float32)
    we = scale * jax.random.normal(ks[3], (L, E, H), jnp.float32)
    return wi, bi, wh, we


if __name__ == "__main__":
    batch = 2
    seq = 8
    input_size = 32     # must equal hidden_size for num_layers > 1 (PyTorch semantics)
    hidden_size = 32
    extra_input_size = 16
    num_layers = 2

    key = jax.random.PRNGKey(0)
    kx, ke, kp = jax.random.split(key, 3)
    x = jax.random.normal(kx, (batch, seq, input_size), jnp.float32)
    extra_input = jax.random.normal(ke, (batch, extra_input_size), jnp.float32)
    params = init_params(kp, input_size=input_size, hidden_size=hidden_size,
                         extra_input_size=extra_input_size, num_layers=num_layers)

    out, h_fin = forget_gru(x, extra_input, params,
                            num_layers=num_layers, hidden_size=hidden_size,
                            block_t=4)   # 2 time blocks of 4 steps
    out = jax.block_until_ready(out)
    h_fin = jax.block_until_ready(h_fin)

    ref_out, ref_h = forget_gru_ref(x, extra_input, params,
                                    num_layers=num_layers, hidden_size=hidden_size)

    assert out.shape == (batch, seq, hidden_size)
    assert h_fin.shape == (num_layers, batch, hidden_size)
    np.testing.assert_allclose(np.asarray(out), np.asarray(ref_out),
                               rtol=1e-5, atol=1e-5)
    np.testing.assert_allclose(np.asarray(h_fin), np.asarray(ref_h),
                               rtol=1e-5, atol=1e-5)
    print("KERNEL_OK")
</pallas_src>

<mosaic_0001>
module attributes {stable_mosaic.version = 11 : i64} {
  func.func @forget_gru_kernel(%arg0: i32, %arg1: memref<4x3x8x32xf32, #tpu.memory_space<vmem>>, %arg2: memref<2x8x32xf32, #tpu.memory_space<vmem>>, %arg3: memref<2x3x32x32xf32, #tpu.memory_space<vmem>>, %arg4: memref<2x3x1x32xf32, #tpu.memory_space<vmem>>, %arg5: memref<2x3x32x32xf32, #tpu.memory_space<vmem>>, %arg6: memref<4x8x32xf32, #tpu.memory_space<vmem>>, %arg7: memref<2x8x32xf32, #tpu.memory_space<vmem>>, %arg8: memref<2x8x32xf32, #tpu.memory_space<vmem>>) attributes {dimension_semantics = [#tpu.dimension_semantics<arbitrary>], iteration_bounds = array<i64: 2>, scalar_prefetch = 0 : i64, scratch_operands = 1 : i64, tpu.core_type = #tpu.core_type<tc>, window_params = [{transform_indices = @transform_0, window_bounds = array<i64: 4, 3, 8, 32>}, {pipeline_mode = #tpu.pipeline_mode<synchronous>, transform_indices = @transform_1, window_bounds = array<i64: 2, 8, 32>}, {pipeline_mode = #tpu.pipeline_mode<synchronous>, transform_indices = @transform_2, window_bounds = array<i64: 2, 3, 32, 32>}, {pipeline_mode = #tpu.pipeline_mode<synchronous>, transform_indices = @transform_3, window_bounds = array<i64: 2, 3, 1, 32>}, {pipeline_mode = #tpu.pipeline_mode<synchronous>, transform_indices = @transform_4, window_bounds = array<i64: 2, 3, 32, 32>}, {transform_indices = @transform_5, window_bounds = array<i64: 4, 8, 32>}, {pipeline_mode = #tpu.pipeline_mode<synchronous>, transform_indices = @transform_6, window_bounds = array<i64: 2, 8, 32>}]} {
    %c0_i32 = arith.constant 0 : i32
    %0 = arith.cmpi eq, %arg0, %c0_i32 : i32
    %1 = arith.extui %0 : i1 to i32
    %c0_i32_0 = arith.constant 0 : i32
    %2 = arith.cmpi ne, %1, %c0_i32_0 : i32
    scf.if %2 {
      %cst_183 = arith.constant 0.000000e+00 : f32
      %308 = vector.broadcast %cst_183 : f32 to vector<2x8x32xf32>
      %c0_184 = arith.constant 0 : index
      %c0_185 = arith.constant 0 : index
      %c0_186 = arith.constant 0 : index
      %309 = vector.load %arg8[%c0_184, %c0_185, %c0_186] : memref<2x8x32xf32, #tpu.memory_space<vmem>>, vector<2x8x32xf32>
      tpu.vector_store %arg8[%c0_184, %c0_185, %c0_186], %308 {strides = array<i32>} : memref<2x8x32xf32, #tpu.memory_space<vmem>>, vector<2x8x32xf32>,
    } else {
    }
    %c0 = arith.constant 0 : index
    %c0_1 = arith.constant 0 : index
    %c0_2 = arith.constant 0 : index
    %3 = vector.load %arg2[%c0, %c0_1, %c0_2] : memref<2x8x32xf32, #tpu.memory_space<vmem>>, vector<1x8x32xf32>
    %4 = vector.shape_cast %3 : vector<1x8x32xf32> to vector<8x32xf32>
    %c1 = arith.constant 1 : index
    %c0_3 = arith.constant 0 : index
    %c0_4 = arith.constant 0 : index
    %5 = vector.load %arg2[%c1, %c0_3, %c0_4] : memref<2x8x32xf32, #tpu.memory_space<vmem>>, vector<1x8x32xf32>
    %6 = vector.shape_cast %5 : vector<1x8x32xf32> to vector<8x32xf32>
    %c0_5 = arith.constant 0 : index
    %c0_6 = arith.constant 0 : index
    %c0_7 = arith.constant 0 : index
    %c0_8 = arith.constant 0 : index
    %7 = vector.load %arg5[%c0_5, %c0_6, %c0_7, %c0_8] : memref<2x3x32x32xf32, #tpu.memory_space<vmem>>, vector<1x1x32x32xf32>
    %8 = vector.shape_cast %7 : vector<1x1x32x32xf32> to vector<32x32xf32>
    %c0_9 = arith.constant 0 : index
    %c1_10 = arith.constant 1 : index
    %c0_11 = arith.constant 0 : index
    %c0_12 = arith.constant 0 : index
    %9 = vector.load %arg5[%c0_9, %c1_10, %c0_11, %c0_12] : memref<2x3x32x32xf32, #tpu.memory_space<vmem>>, vector<1x1x32x32xf32>
    %10 = vector.shape_cast %9 : vector<1x1x32x32xf32> to vector<32x32xf32>
    %c0_13 = arith.constant 0 : index
    %c2 = arith.constant 2 : index
    %c0_14 = arith.constant 0 : index
    %c0_15 = arith.constant 0 : index
    %11 = vector.load %arg5[%c0_13, %c2, %c0_14, %c0_15] : memref<2x3x32x32xf32, #tpu.memory_space<vmem>>, vector<1x1x32x32xf32>
    %12 = vector.shape_cast %11 : vector<1x1x32x32xf32> to vector<32x32xf32>
    %c1_16 = arith.constant 1 : index
    %c0_17 = arith.constant 0 : index
    %c0_18 = arith.constant 0 : index
    %c0_19 = arith.constant 0 : index
    %13 = vector.load %arg5[%c1_16, %c0_17, %c0_18, %c0_19] : memref<2x3x32x32xf32, #tpu.memory_space<vmem>>, vector<1x1x32x32xf32>
    %14 = vector.shape_cast %13 : vector<1x1x32x32xf32> to vector<32x32xf32>
    %c1_20 = arith.constant 1 : index
    %c1_21 = arith.constant 1 : index
    %c0_22 = arith.constant 0 : index
    %c0_23 = arith.constant 0 : index
    %15 = vector.load %arg5[%c1_20, %c1_21, %c0_22, %c0_23] : memref<2x3x32x32xf32, #tpu.memory_space<vmem>>, vector<1x1x32x32xf32>
    %16 = vector.shape_cast %15 : vector<1x1x32x32xf32> to vector<32x32xf32>
    %c1_24 = arith.constant 1 : index
    %c2_25 = arith.constant 2 : index
    %c0_26 = arith.constant 0 : index
    %c0_27 = arith.constant 0 : index
    %17 = vector.load %arg5[%c1_24, %c2_25, %c0_26, %c0_27] : memref<2x3x32x32xf32, #tpu.memory_space<vmem>>, vector<1x1x32x32xf32>
    %18 = vector.shape_cast %17 : vector<1x1x32x32xf32> to vector<32x32xf32>
    %c1_28 = arith.constant 1 : index
    %c0_29 = arith.constant 0 : index
    %c0_30 = arith.constant 0 : index
    %c0_31 = arith.constant 0 : index
    %19 = vector.load %arg3[%c1_28, %c0_29, %c0_30, %c0_31] : memref<2x3x32x32xf32, #tpu.memory_space<vmem>>, vector<1x1x32x32xf32>
    %20 = vector.shape_cast %19 : vector<1x1x32x32xf32> to vector<32x32xf32>
    %c1_32 = arith.constant 1 : index
    %c1_33 = arith.constant 1 : index
    %c0_34 = arith.constant 0 : index
    %c0_35 = arith.constant 0 : index
    %21 = vector.load %arg3[%c1_32, %c1_33, %c0_34, %c0_35] : memref<2x3x32x32xf32, #tpu.memory_space<vmem>>, vector<1x1x32x32xf32>
    %22 = vector.shape_cast %21 : vector<1x1x32x32xf32> to vector<32x32xf32>
    %c1_36 = arith.constant 1 : index
    %c2_37 = arith.constant 2 : index
    %c0_38 = arith.constant 0 : index
    %c0_39 = arith.constant 0 : index
    %23 = vector.load %arg3[%c1_36, %c2_37, %c0_38, %c0_39] : memref<2x3x32x32xf32, #tpu.memory_space<vmem>>, vector<1x1x32x32xf32>
    %24 = vector.shape_cast %23 : vector<1x1x32x32xf32> to vector<32x32xf32>
    %c1_40 = arith.constant 1 : index
    %c0_41 = arith.constant 0 : index
    %c0_42 = arith.constant 0 : index
    %c0_43 = arith.constant 0 : index
    %25 = vector.load %arg4[%c1_40, %c0_41, %c0_42, %c0_43] : memref<2x3x1x32xf32, #tpu.memory_space<vmem>>, vector<1x1x1x32xf32>
    %26 = vector.shape_cast %25 : vector<1x1x1x32xf32> to vector<1x32xf32>
    %c1_44 = arith.constant 1 : index
    %c1_45 = arith.constant 1 : index
    %c0_46 = arith.constant 0 : index
    %c0_47 = arith.constant 0 : index
    %27 = vector.load %arg4[%c1_44, %c1_45, %c0_46, %c0_47] : memref<2x3x1x32xf32, #tpu.memory_space<vmem>>, vector<1x1x1x32xf32>
    %28 = vector.shape_cast %27 : vector<1x1x1x32xf32> to vector<1x32xf32>
    %c1_48 = arith.constant 1 : index
    %c2_49 = arith.constant 2 : index
    %c0_50 = arith.constant 0 : index
    %c0_51 = arith.constant 0 : index
    %29 = vector.load %arg4[%c1_48, %c2_49, %c0_50, %c0_51] : memref<2x3x1x32xf32, #tpu.memory_space<vmem>>, vector<1x1x1x32xf32>
    %30 = vector.shape_cast %29 : vector<1x1x1x32xf32> to vector<1x32xf32>
    %c0_52 = arith.constant 0 : index
    %c0_53 = arith.constant 0 : index
    %c0_54 = arith.constant 0 : index
    %31 = vector.load %arg8[%c0_52, %c0_53, %c0_54] : memref<2x8x32xf32, #tpu.memory_space<vmem>>, vector<1x8x32xf32>
    %32 = vector.shape_cast %31 : vector<1x8x32xf32> to vector<8x32xf32>
    %c1_55 = arith.constant 1 : index
    %c0_56 = arith.constant 0 : index
    %c0_57 = arith.constant 0 : index
    %33 = vector.load %arg8[%c1_55, %c0_56, %c0_57] : memref<2x8x32xf32, #tpu.memory_space<vmem>>, vector<1x8x32xf32>
    %34 = vector.shape_cast %33 : vector<1x8x32xf32> to vector<8x32xf32>
    %c0_58 = arith.constant 0 : index
    %c0_59 = arith.constant 0 : index
    %c0_60 = arith.constant 0 : index
    %c0_61 = arith.constant 0 : index
    %35 = vector.load %arg1[%c0_58, %c0_59, %c0_60, %c0_61] : memref<4x3x8x32xf32, #tpu.memory_space<vmem>>, vector<1x1x8x32xf32>
    %36 = vector.shape_cast %35 : vector<1x1x8x32xf32> to vector<8x32xf32>
    %c0_62 = arith.constant 0 : index
    %c1_63 = arith.constant 1 : index
    %c0_64 = arith.constant 0 : index
    %c0_65 = arith.constant 0 : index
    %37 = vector.load %arg1[%c0_62, %c1_63, %c0_64, %c0_65] : memref<4x3x8x32xf32, #tpu.memory_space<vmem>>, vector<1x1x8x32xf32>
    %38 = vector.shape_cast %37 : vector<1x1x8x32xf32> to vector<8x32xf32>
    %c0_66 = arith.constant 0 : index
    %c2_67 = arith.constant 2 : index
    %c0_68 = arith.constant 0 : index
    %c0_69 = arith.constant 0 : index
    %39 = vector.load %arg1[%c0_66, %c2_67, %c0_68, %c0_69] : memref<4x3x8x32xf32, #tpu.memory_space<vmem>>, vector<1x1x8x32xf32>
    %40 = vector.shape_cast %39 : vector<1x1x8x32xf32> to vector<8x32xf32>
    %cst = arith.constant dense<0.000000e+00> : vector<8x32xf32>
    %41 = tpu.matmul %32, %8, %cst {dimension_numbers = #tpu.dot_dimension_numbers<[1], [0], [0], [1], [0, 0, 1, 1], [], []>} : vector<8x32xf32>, vector<32x32xf32>, vector<8x32xf32> -> vector<8x32xf32>
    %cst_70 = arith.constant dense<0.000000e+00> : vector<8x32xf32>
    %42 = tpu.matmul %32, %10, %cst_70 {dimension_numbers = #tpu.dot_dimension_numbers<[1], [0], [0], [1], [0, 0, 1, 1], [], []>} : vector<8x32xf32>, vector<32x32xf32>, vector<8x32xf32> -> vector<8x32xf32>
    %cst_71 = arith.constant dense<0.000000e+00> : vector<8x32xf32>
    %43 = tpu.matmul %32, %12, %cst_71 {dimension_numbers = #tpu.dot_dimension_numbers<[1], [0], [0], [1], [0, 0, 1, 1], [], []>} : vector<8x32xf32>, vector<32x32xf32>, vector<8x32xf32> -> vector<8x32xf32>
    %44 = arith.addf %36, %41 : vector<8x32xf32>
    %45 = arith.addf %44, %4 : vector<8x32xf32>
    %46 = arith.negf %45 : vector<8x32xf32>
    %47 = math.exp %46 : vector<8x32xf32>
    %cst_72 = arith.constant 1.000000e+00 : f32
    %48 = vector.broadcast %cst_72 : f32 to vector<8x32xf32>
    %49 = arith.addf %48, %47 : vector<8x32xf32>
    %50 = arith.divf %48, %49 : vector<8x32xf32>
    %51 = arith.addf %38, %42 : vector<8x32xf32>
    %52 = arith.negf %51 : vector<8x32xf32>
    %53 = math.exp %52 : vector<8x32xf32>
    %cst_73 = arith.constant 1.000000e+00 : f32
    %54 = vector.broadcast %cst_73 : f32 to vector<8x32xf32>
    %55 = arith.addf %54, %53 : vector<8x32xf32>
    %56 = arith.divf %54, %55 : vector<8x32xf32>
    %57 = arith.mulf %50, %43 : vector<8x32xf32>
    %58 = arith.addf %40, %57 : vector<8x32xf32>
    %59 = math.tanh %58 : vector<8x32xf32>
    %cst_74 = arith.constant 1.000000e+00 : f32
    %60 = vector.broadcast %cst_74 : f32 to vector<8x32xf32>
    %61 = arith.subf %60, %56 : vector<8x32xf32>
    %62 = arith.mulf %61, %59 : vector<8x32xf32>
    %63 = arith.mulf %56, %32 : vector<8x32xf32>
    %64 = arith.addf %62, %63 : vector<8x32xf32>
    %cst_75 = arith.constant dense<0.000000e+00> : vector<8x32xf32>
    %65 = tpu.matmul %64, %20, %cst_75 {dimension_numbers = #tpu.dot_dimension_numbers<[1], [0], [0], [1], [0, 0, 1, 1], [], []>} : vector<8x32xf32>, vector<32x32xf32>, vector<8x32xf32> -> vector<8x32xf32>
    %66 = vector.broadcast %26 : vector<1x32xf32> to vector<8x32xf32>
    %67 = arith.addf %65, %66 : vector<8x32xf32>
    %cst_76 = arith.constant dense<0.000000e+00> : vector<8x32xf32>
    %68 = tpu.matmul %64, %22, %cst_76 {dimension_numbers = #tpu.dot_dimension_numbers<[1], [0], [0], [1], [0, 0, 1, 1], [], []>} : vector<8x32xf32>, vector<32x32xf32>, vector<8x32xf32> -> vector<8x32xf32>
    %69 = vector.broadcast %28 : vector<1x32xf32> to vector<8x32xf32>
    %70 = arith.addf %68, %69 : vector<8x32xf32>
    %cst_77 = arith.constant dense<0.000000e+00> : vector<8x32xf32>
    %71 = tpu.matmul %64, %24, %cst_77 {dimension_numbers = #tpu.dot_dimension_numbers<[1], [0], [0], [1], [0, 0, 1, 1], [], []>} : vector<8x32xf32>, vector<32x32xf32>, vector<8x32xf32> -> vector<8x32xf32>
    %72 = vector.broadcast %30 : vector<1x32xf32> to vector<8x32xf32>
    %73 = arith.addf %71, %72 : vector<8x32xf32>
    %cst_78 = arith.constant dense<0.000000e+00> : vector<8x32xf32>
    %74 = tpu.matmul %34, %14, %cst_78 {dimension_numbers = #tpu.dot_dimension_numbers<[1], [0], [0], [1], [0, 0, 1, 1], [], []>} : vector<8x32xf32>, vector<32x32xf32>, vector<8x32xf32> -> vector<8x32xf32>
    %cst_79 = arith.constant dense<0.000000e+00> : vector<8x32xf32>
    %75 = tpu.matmul %34, %16, %cst_79 {dimension_numbers = #tpu.dot_dimension_numbers<[1], [0], [0], [1], [0, 0, 1, 1], [], []>} : vector<8x32xf32>, vector<32x32xf32>, vector<8x32xf32> -> vector<8x32xf32>
    %cst_80 = arith.constant dense<0.000000e+00> : vector<8x32xf32>
    %76 = tpu.matmul %34, %18, %cst_80 {dimension_numbers = #tpu.dot_dimension_numbers<[1], [0], [0], [1], [0, 0, 1, 1], [], []>} : vector<8x32xf32>, vector<32x32xf32>, vector<8x32xf32> -> vector<8x32xf32>
    %77 = arith.addf %67, %74 : vector<8x32xf32>
    %78 = arith.addf %77, %6 : vector<8x32xf32>
    %79 = arith.negf %78 : vector<8x32xf32>
    %80 = math.exp %79 : vector<8x32xf32>
    %cst_81 = arith.constant 1.000000e+00 : f32
    %81 = vector.broadcast %cst_81 : f32 to vector<8x32xf32>
    %82 = arith.addf %81, %80 : vector<8x32xf32>
    %83 = arith.divf %81, %82 : vector<8x32xf32>
    %84 = arith.addf %70, %75 : vector<8x32xf32>
    %85 = arith.negf %84 : vector<8x32xf32>
    %86 = math.exp %85 : vector<8x32xf32>
    %cst_82 = arith.constant 1.000000e+00 : f32
    %87 = vector.broadcast %cst_82 : f32 to vector<8x32xf32>
    %88 = arith.addf %87, %86 : vector<8x32xf32>
    %89 = arith.divf %87, %88 : vector<8x32xf32>
    %90 = arith.mulf %83, %76 : vector<8x32xf32>
    %91 = arith.addf %73, %90 : vector<8x32xf32>
    %92 = math.tanh %91 : vector<8x32xf32>
    %cst_83 = arith.constant 1.000000e+00 : f32
    %93 = vector.broadcast %cst_83 : f32 to vector<8x32xf32>
    %94 = arith.subf %93, %89 : vector<8x32xf32>
    %95 = arith.mulf %94, %92 : vector<8x32xf32>
    %96 = arith.mulf %89, %34 : vector<8x32xf32>
    %97 = arith.addf %95, %96 : vector<8x32xf32>
    %c0_84 = arith.constant 0 : index
    %c0_85 = arith.constant 0 : index
    %c0_86 = arith.constant 0 : index
    %98 = vector.load %arg6[%c0_84, %c0_85, %c0_86] : memref<4x8x32xf32, #tpu.memory_space<vmem>>, vector<1x8x32xf32>
    %99 = vector.shape_cast %98 : vector<1x8x32xf32> to vector<8x32xf32>
    %100 = vector.shape_cast %97 : vector<8x32xf32> to vector<1x8x32xf32>
    tpu.vector_store %arg6[%c0_84, %c0_85, %c0_86], %100 {strides = array<i32>} : memref<4x8x32xf32, #tpu.memory_space<vmem>>, vector<1x8x32xf32>,
    %c1_87 = arith.constant 1 : index
    %c0_88 = arith.constant 0 : index
    %c0_89 = arith.constant 0 : index
    %c0_90 = arith.constant 0 : index
    %101 = vector.load %arg1[%c1_87, %c0_88, %c0_89, %c0_90] : memref<4x3x8x32xf32, #tpu.memory_space<vmem>>, vector<1x1x8x32xf32>
    %102 = vector.shape_cast %101 : vector<1x1x8x32xf32> to vector<8x32xf32>
    %c1_91 = arith.constant 1 : index
    %c1_92 = arith.constant 1 : index
    %c0_93 = arith.constant 0 : index
    %c0_94 = arith.constant 0 : index
    %103 = vector.load %arg1[%c1_91, %c1_92, %c0_93, %c0_94] : memref<4x3x8x32xf32, #tpu.memory_space<vmem>>, vector<1x1x8x32xf32>
    %104 = vector.shape_cast %103 : vector<1x1x8x32xf32> to vector<8x32xf32>
    %c1_95 = arith.constant 1 : index
    %c2_96 = arith.constant 2 : index
    %c0_97 = arith.constant 0 : index
    %c0_98 = arith.constant 0 : index
    %105 = vector.load %arg1[%c1_95, %c2_96, %c0_97, %c0_98] : memref<4x3x8x32xf32, #tpu.memory_space<vmem>>, vector<1x1x8x32xf32>
    %106 = vector.shape_cast %105 : vector<1x1x8x32xf32> to vector<8x32xf32>
    %cst_99 = arith.constant dense<0.000000e+00> : vector<8x32xf32>
    %107 = tpu.matmul %64, %8, %cst_99 {dimension_numbers = #tpu.dot_dimension_numbers<[1], [0], [0], [1], [0, 0, 1, 1], [], []>} : vector<8x32xf32>, vector<32x32xf32>, vector<8x32xf32> -> vector<8x32xf32>
    %cst_100 = arith.constant dense<0.000000e+00> : vector<8x32xf32>
    %108 = tpu.matmul %64, %10, %cst_100 {dimension_numbers = #tpu.dot_dimension_numbers<[1], [0], [0], [1], [0, 0, 1, 1], [], []>} : vector<8x32xf32>, vector<32x32xf32>, vector<8x32xf32> -> vector<8x32xf32>
    %cst_101 = arith.constant dense<0.000000e+00> : vector<8x32xf32>
    %109 = tpu.matmul %64, %12, %cst_101 {dimension_numbers = #tpu.dot_dimension_numbers<[1], [0], [0], [1], [0, 0, 1, 1], [], []>} : vector<8x32xf32>, vector<32x32xf32>, vector<8x32xf32> -> vector<8x32xf32>
    %110 = arith.addf %102, %107 : vector<8x32xf32>
    %111 = arith.addf %110, %4 : vector<8x32xf32>
    %112 = arith.negf %111 : vector<8x32xf32>
    %113 = math.exp %112 : vector<8x32xf32>
    %cst_102 = arith.constant 1.000000e+00 : f32
    %114 = vector.broadcast %cst_102 : f32 to vector<8x32xf32>
    %115 = arith.addf %114, %113 : vector<8x32xf32>
    %116 = arith.divf %114, %115 : vector<8x32xf32>
    %117 = arith.addf %104, %108 : vector<8x32xf32>
    %118 = arith.negf %117 : vector<8x32xf32>
    %119 = math.exp %118 : vector<8x32xf32>
    %cst_103 = arith.constant 1.000000e+00 : f32
    %120 = vector.broadcast %cst_103 : f32 to vector<8x32xf32>
    %121 = arith.addf %120, %119 : vector<8x32xf32>
    %122 = arith.divf %120, %121 : vector<8x32xf32>
    %123 = arith.mulf %116, %109 : vector<8x32xf32>
    %124 = arith.addf %106, %123 : vector<8x32xf32>
    %125 = math.tanh %124 : vector<8x32xf32>
    %cst_104 = arith.constant 1.000000e+00 : f32
    %126 = vector.broadcast %cst_104 : f32 to vector<8x32xf32>
    %127 = arith.subf %126, %122 : vector<8x32xf32>
    %128 = arith.mulf %127, %125 : vector<8x32xf32>
    %129 = arith.mulf %122, %64 : vector<8x32xf32>
    %130 = arith.addf %128, %129 : vector<8x32xf32>
    %cst_105 = arith.constant dense<0.000000e+00> : vector<8x32xf32>
    %131 = tpu.matmul %130, %20, %cst_105 {dimension_numbers = #tpu.dot_dimension_numbers<[1], [0], [0], [1], [0, 0, 1, 1], [], []>} : vector<8x32xf32>, vector<32x32xf32>, vector<8x32xf32> -> vector<8x32xf32>
    %132 = vector.broadcast %26 : vector<1x32xf32> to vector<8x32xf32>
    %133 = arith.addf %131, %132 : vector<8x32xf32>
    %cst_106 = arith.constant dense<0.000000e+00> : vector<8x32xf32>
    %134 = tpu.matmul %130, %22, %cst_106 {dimension_numbers = #tpu.dot_dimension_numbers<[1], [0], [0], [1], [0, 0, 1, 1], [], []>} : vector<8x32xf32>, vector<32x32xf32>, vector<8x32xf32> -> vector<8x32xf32>
    %135 = vector.broadcast %28 : vector<1x32xf32> to vector<8x32xf32>
    %136 = arith.addf %134, %135 : vector<8x32xf32>
    %cst_107 = arith.constant dense<0.000000e+00> : vector<8x32xf32>
    %137 = tpu.matmul %130, %24, %cst_107 {dimension_numbers = #tpu.dot_dimension_numbers<[1], [0], [0], [1], [0, 0, 1, 1], [], []>} : vector<8x32xf32>, vector<32x32xf32>, vector<8x32xf32> -> vector<8x32xf32>
    %138 = vector.broadcast %30 : vector<1x32xf32> to vector<8x32xf32>
    %139 = arith.addf %137, %138 : vector<8x32xf32>
    %cst_108 = arith.constant dense<0.000000e+00> : vector<8x32xf32>
    %140 = tpu.matmul %97, %14, %cst_108 {dimension_numbers = #tpu.dot_dimension_numbers<[1], [0], [0], [1], [0, 0, 1, 1], [], []>} : vector<8x32xf32>, vector<32x32xf32>, vector<8x32xf32> -> vector<8x32xf32>
    %cst_109 = arith.constant dense<0.000000e+00> : vector<8x32xf32>
    %141 = tpu.matmul %97, %16, %cst_109 {dimension_numbers = #tpu.dot_dimension_numbers<[1], [0], [0], [1], [0, 0, 1, 1], [], []>} : vector<8x32xf32>, vector<32x32xf32>, vector<8x32xf32> -> vector<8x32xf32>
    %cst_110 = arith.constant dense<0.000000e+00> : vector<8x32xf32>
    %142 = tpu.matmul %97, %18, %cst_110 {dimension_numbers = #tpu.dot_dimension_numbers<[1], [0], [0], [1], [0, 0, 1, 1], [], []>} : vector<8x32xf32>, vector<32x32xf32>, vector<8x32xf32> -> vector<8x32xf32>
    %143 = arith.addf %133, %140 : vector<8x32xf32>
    %144 = arith.addf %143, %6 : vector<8x32xf32>
    %145 = arith.negf %144 : vector<8x32xf32>
    %146 = math.exp %145 : vector<8x32xf32>
    %cst_111 = arith.constant 1.000000e+00 : f32
    %147 = vector.broadcast %cst_111 : f32 to vector<8x32xf32>
    %148 = arith.addf %147, %146 : vector<8x32xf32>
    %149 = arith.divf %147, %148 : vector<8x32xf32>
    %150 = arith.addf %136, %141 : vector<8x32xf32>
    %151 = arith.negf %150 : vector<8x32xf32>
    %152 = math.exp %151 : vector<8x32xf32>
    %cst_112 = arith.constant 1.000000e+00 : f32
    %153 = vector.broadcast %cst_112 : f32 to vector<8x32xf32>
    %154 = arith.addf %153, %152 : vector<8x32xf32>
    %155 = arith.divf %153, %154 : vector<8x32xf32>
    %156 = arith.mulf %149, %142 : vector<8x32xf32>
    %157 = arith.addf %139, %156 : vector<8x32xf32>
    %158 = math.tanh %157 : vector<8x32xf32>
    %cst_113 = arith.constant 1.000000e+00 : f32
    %159 = vector.broadcast %cst_113 : f32 to vector<8x32xf32>
    %160 = arith.subf %159, %155 : vector<8x32xf32>
    %161 = arith.mulf %160, %158 : vector<8x32xf32>
    %162 = arith.mulf %155, %97 : vector<8x32xf32>
    %163 = arith.addf %161, %162 : vector<8x32xf32>
    %c1_114 = arith.constant 1 : index
    %c0_115 = arith.constant 0 : index
    %c0_116 = arith.constant 0 : index
    %164 = vector.load %arg6[%c1_114, %c0_115, %c0_116] : memref<4x8x32xf32, #tpu.memory_space<vmem>>, vector<1x8x32xf32>
    %165 = vector.shape_cast %164 : vector<1x8x32xf32> to vector<8x32xf32>
    %166 = vector.shape_cast %163 : vector<8x32xf32> to vector<1x8x32xf32>
    tpu.vector_store %arg6[%c1_114, %c0_115, %c0_116], %166 {strides = array<i32>} : memref<4x8x32xf32, #tpu.memory_space<vmem>>, vector<1x8x32xf32>,
    %c2_117 = arith.constant 2 : index
    %c0_118 = arith.constant 0 : index
    %c0_119 = arith.constant 0 : index
    %c0_120 = arith.constant 0 : index
    %167 = vector.load %arg1[%c2_117, %c0_118, %c0_119, %c0_120] : memref<4x3x8x32xf32, #tpu.memory_space<vmem>>, vector<1x1x8x32xf32>
    %168 = vector.shape_cast %167 : vector<1x1x8x32xf32> to vector<8x32xf32>
    %c2_121 = arith.constant 2 : index
    %c1_122 = arith.constant 1 : index
    %c0_123 = arith.constant 0 : index
    %c0_124 = arith.constant 0 : index
    %169 = vector.load %arg1[%c2_121, %c1_122, %c0_123, %c0_124] : memref<4x3x8x32xf32, #tpu.memory_space<vmem>>, vector<1x1x8x32xf32>
    %170 = vector.shape_cast %169 : vector<1x1x8x32xf32> to vector<8x32xf32>
    %c2_125 = arith.constant 2 : index
    %c2_126 = arith.constant 2 : index
    %c0_127 = arith.constant 0 : index
    %c0_128 = arith.constant 0 : index
    %171 = vector.load %arg1[%c2_125, %c2_126, %c0_127, %c0_128] : memref<4x3x8x32xf32, #tpu.memory_space<vmem>>, vector<1x1x8x32xf32>
    %172 = vector.shape_cast %171 : vector<1x1x8x32xf32> to vector<8x32xf32>
    %cst_129 = arith.constant dense<0.000000e+00> : vector<8x32xf32>
    %173 = tpu.matmul %130, %8, %cst_129 {dimension_numbers = #tpu.dot_dimension_numbers<[1], [0], [0], [1], [0, 0, 1, 1], [], []>} : vector<8x32xf32>, vector<32x32xf32>, vector<8x32xf32> -> vector<8x32xf32>
    %cst_130 = arith.constant dense<0.000000e+00> : vector<8x32xf32>
    %174 = tpu.matmul %130, %10, %cst_130 {dimension_numbers = #tpu.dot_dimension_numbers<[1], [0], [0], [1], [0, 0, 1, 1], [], []>} : vector<8x32xf32>, vector<32x32xf32>, vector<8x32xf32> -> vector<8x32xf32>
    %cst_131 = arith.constant dense<0.000000e+00> : vector<8x32xf32>
    %175 = tpu.matmul %130, %12, %cst_131 {dimension_numbers = #tpu.dot_dimension_numbers<[1], [0], [0], [1], [0, 0, 1, 1], [], []>} : vector<8x32xf32>, vector<32x32xf32>, vector<8x32xf32> -> vector<8x32xf32>
    %176 = arith.addf %168, %173 : vector<8x32xf32>
    %177 = arith.addf %176, %4 : vector<8x32xf32>
    %178 = arith.negf %177 : vector<8x32xf32>
    %179 = math.exp %178 : vector<8x32xf32>
    %cst_132 = arith.constant 1.000000e+00 : f32
    %180 = vector.broadcast %cst_132 : f32 to vector<8x32xf32>
    %181 = arith.addf %180, %179 : vector<8x32xf32>
    %182 = arith.divf %180, %181 : vector<8x32xf32>
    %183 = arith.addf %170, %174 : vector<8x32xf32>
    %184 = arith.negf %183 : vector<8x32xf32>
    %185 = math.exp %184 : vector<8x32xf32>
    %cst_133 = arith.constant 1.000000e+00 : f32
    %186 = vector.broadcast %cst_133 : f32 to vector<8x32xf32>
    %187 = arith.addf %186, %185 : vector<8x32xf32>
    %188 = arith.divf %186, %187 : vector<8x32xf32>
    %189 = arith.mulf %182, %175 : vector<8x32xf32>
    %190 = arith.addf %172, %189 : vector<8x32xf32>
    %191 = math.tanh %190 : vector<8x32xf32>
    %cst_134 = arith.constant 1.000000e+00 : f32
    %192 = vector.broadcast %cst_134 : f32 to vector<8x32xf32>
    %193 = arith.subf %192, %188 : vector<8x32xf32>
    %194 = arith.mulf %193, %191 : vector<8x32xf32>
    %195 = arith.mulf %188, %130 : vector<8x32xf32>
    %196 = arith.addf %194, %195 : vector<8x32xf32>
    %cst_135 = arith.constant dense<0.000000e+00> : vector<8x32xf32>
    %197 = tpu.matmul %196, %20, %cst_135 {dimension_numbers = #tpu.dot_dimension_numbers<[1], [0], [0], [1], [0, 0, 1, 1], [], []>} : vector<8x32xf32>, vector<32x32xf32>, vector<8x32xf32> -> vector<8x32xf32>
    %198 = vector.broadcast %26 : vector<1x32xf32> to vector<8x32xf32>
    %199 = arith.addf %197, %198 : vector<8x32xf32>
    %cst_136 = arith.constant dense<0.000000e+00> : vector<8x32xf32>
    %200 = tpu.matmul %196, %22, %cst_136 {dimension_numbers = #tpu.dot_dimension_numbers<[1], [0], [0], [1], [0, 0, 1, 1], [], []>} : vector<8x32xf32>, vector<32x32xf32>, vector<8x32xf32> -> vector<8x32xf32>
    %201 = vector.broadcast %28 : vector<1x32xf32> to vector<8x32xf32>
    %202 = arith.addf %200, %201 : vector<8x32xf32>
    %cst_137 = arith.constant dense<0.000000e+00> : vector<8x32xf32>
    %203 = tpu.matmul %196, %24, %cst_137 {dimension_numbers = #tpu.dot_dimension_numbers<[1], [0], [0], [1], [0, 0, 1, 1], [], []>} : vector<8x32xf32>, vector<32x32xf32>, vector<8x32xf32> -> vector<8x32xf32>
    %204 = vector.broadcast %30 : vector<1x32xf32> to vector<8x32xf32>
    %205 = arith.addf %203, %204 : vector<8x32xf32>
    %cst_138 = arith.constant dense<0.000000e+00> : vector<8x32xf32>
    %206 = tpu.matmul %163, %14, %cst_138 {dimension_numbers = #tpu.dot_dimension_numbers<[1], [0], [0], [1], [0, 0, 1, 1], [], []>} : vector<8x32xf32>, vector<32x32xf32>, vector<8x32xf32> -> vector<8x32xf32>
    %cst_139 = arith.constant dense<0.000000e+00> : vector<8x32xf32>
    %207 = tpu.matmul %163, %16, %cst_139 {dimension_numbers = #tpu.dot_dimension_numbers<[1], [0], [0], [1], [0, 0, 1, 1], [], []>} : vector<8x32xf32>, vector<32x32xf32>, vector<8x32xf32> -> vector<8x32xf32>
    %cst_140 = arith.constant dense<0.000000e+00> : vector<8x32xf32>
    %208 = tpu.matmul %163, %18, %cst_140 {dimension_numbers = #tpu.dot_dimension_numbers<[1], [0], [0], [1], [0, 0, 1, 1], [], []>} : vector<8x32xf32>, vector<32x32xf32>, vector<8x32xf32> -> vector<8x32xf32>
    %209 = arith.addf %199, %206 : vector<8x32xf32>
    %210 = arith.addf %209, %6 : vector<8x32xf32>
    %211 = arith.negf %210 : vector<8x32xf32>
    %212 = math.exp %211 : vector<8x32xf32>
    %cst_141 = arith.constant 1.000000e+00 : f32
    %213 = vector.broadcast %cst_141 : f32 to vector<8x32xf32>
    %214 = arith.addf %213, %212 : vector<8x32xf32>
    %215 = arith.divf %213, %214 : vector<8x32xf32>
    %216 = arith.addf %202, %207 : vector<8x32xf32>
    %217 = arith.negf %216 : vector<8x32xf32>
    %218 = math.exp %217 : vector<8x32xf32>
    %cst_142 = arith.constant 1.000000e+00 : f32
    %219 = vector.broadcast %cst_142 : f32 to vector<8x32xf32>
    %220 = arith.addf %219, %218 : vector<8x32xf32>
    %221 = arith.divf %219, %220 : vector<8x32xf32>
    %222 = arith.mulf %215, %208 : vector<8x32xf32>
    %223 = arith.addf %205, %222 : vector<8x32xf32>
    %224 = math.tanh %223 : vector<8x32xf32>
    %cst_143 = arith.constant 1.000000e+00 : f32
    %225 = vector.broadcast %cst_143 : f32 to vector<8x32xf32>
    %226 = arith.subf %225, %221 : vector<8x32xf32>
    %227 = arith.mulf %226, %224 : vector<8x32xf32>
    %228 = arith.mulf %221, %163 : vector<8x32xf32>
    %229 = arith.addf %227, %228 : vector<8x32xf32>
    %c2_144 = arith.constant 2 : index
    %c0_145 = arith.constant 0 : index
    %c0_146 = arith.constant 0 : index
    %230 = vector.load %arg6[%c2_144, %c0_145, %c0_146] : memref<4x8x32xf32, #tpu.memory_space<vmem>>, vector<1x8x32xf32>
    %231 = vector.shape_cast %230 : vector<1x8x32xf32> to vector<8x32xf32>
    %232 = vector.shape_cast %229 : vector<8x32xf32> to vector<1x8x32xf32>
    tpu.vector_store %arg6[%c2_144, %c0_145, %c0_146], %232 {strides = array<i32>} : memref<4x8x32xf32, #tpu.memory_space<vmem>>, vector<1x8x32xf32>,
    %c3 = arith.constant 3 : index
    %c0_147 = arith.constant 0 : index
    %c0_148 = arith.constant 0 : index
    %c0_149 = arith.constant 0 : index
    %233 = vector.load %arg1[%c3, %c0_147, %c0_148, %c0_149] : memref<4x3x8x32xf32, #tpu.memory_space<vmem>>, vector<1x1x8x32xf32>
    %234 = vector.shape_cast %233 : vector<1x1x8x32xf32> to vector<8x32xf32>
    %c3_150 = arith.constant 3 : index
    %c1_151 = arith.constant 1 : index
    %c0_152 = arith.constant 0 : index
    %c0_153 = arith.constant 0 : index
    %235 = vector.load %arg1[%c3_150, %c1_151, %c0_152, %c0_153] : memref<4x3x8x32xf32, #tpu.memory_space<vmem>>, vector<1x1x8x32xf32>
    %236 = vector.shape_cast %235 : vector<1x1x8x32xf32> to vector<8x32xf32>
    %c3_154 = arith.constant 3 : index
    %c2_155 = arith.constant 2 : index
    %c0_156 = arith.constant 0 : index
    %c0_157 = arith.constant 0 : index
    %237 = vector.load %arg1[%c3_154, %c2_155, %c0_156, %c0_157] : memref<4x3x8x32xf32, #tpu.memory_space<vmem>>, vector<1x1x8x32xf32>
    %238 = vector.shape_cast %237 : vector<1x1x8x32xf32> to vector<8x32xf32>
    %cst_158 = arith.constant dense<0.000000e+00> : vector<8x32xf32>
    %239 = tpu.matmul %196, %8, %cst_158 {dimension_numbers = #tpu.dot_dimension_numbers<[1], [0], [0], [1], [0, 0, 1, 1], [], []>} : vector<8x32xf32>, vector<32x32xf32>, vector<8x32xf32> -> vector<8x32xf32>
    %cst_159 = arith.constant dense<0.000000e+00> : vector<8x32xf32>
    %240 = tpu.matmul %196, %10, %cst_159 {dimension_numbers = #tpu.dot_dimension_numbers<[1], [0], [0], [1], [0, 0, 1, 1], [], []>} : vector<8x32xf32>, vector<32x32xf32>, vector<8x32xf32> -> vector<8x32xf32>
    %cst_160 = arith.constant dense<0.000000e+00> : vector<8x32xf32>
    %241 = tpu.matmul %196, %12, %cst_160 {dimension_numbers = #tpu.dot_dimension_numbers<[1], [0], [0], [1], [0, 0, 1, 1], [], []>} : vector<8x32xf32>, vector<32x32xf32>, vector<8x32xf32> -> vector<8x32xf32>
    %242 = arith.addf %234, %239 : vector<8x32xf32>
    %243 = arith.addf %242, %4 : vector<8x32xf32>
    %244 = arith.negf %243 : vector<8x32xf32>
    %245 = math.exp %244 : vector<8x32xf32>
    %cst_161 = arith.constant 1.000000e+00 : f32
    %246 = vector.broadcast %cst_161 : f32 to vector<8x32xf32>
    %247 = arith.addf %246, %245 : vector<8x32xf32>
    %248 = arith.divf %246, %247 : vector<8x32xf32>
    %249 = arith.addf %236, %240 : vector<8x32xf32>
    %250 = arith.negf %249 : vector<8x32xf32>
    %251 = math.exp %250 : vector<8x32xf32>
    %cst_162 = arith.constant 1.000000e+00 : f32
    %252 = vector.broadcast %cst_162 : f32 to vector<8x32xf32>
    %253 = arith.addf %252, %251 : vector<8x32xf32>
    %254 = arith.divf %252, %253 : vector<8x32xf32>
    %255 = arith.mulf %248, %241 : vector<8x32xf32>
    %256 = arith.addf %238, %255 : vector<8x32xf32>
    %257 = math.tanh %256 : vector<8x32xf32>
    %cst_163 = arith.constant 1.000000e+00 : f32
    %258 = vector.broadcast %cst_163 : f32 to vector<8x32xf32>
    %259 = arith.subf %258, %254 : vector<8x32xf32>
    %260 = arith.mulf %259, %257 : vector<8x32xf32>
    %261 = arith.mulf %254, %196 : vector<8x32xf32>
    %262 = arith.addf %260, %261 : vector<8x32xf32>
    %cst_164 = arith.constant dense<0.000000e+00> : vector<8x32xf32>
    %263 = tpu.matmul %262, %20, %cst_164 {dimension_numbers = #tpu.dot_dimension_numbers<[1], [0], [0], [1], [0, 0, 1, 1], [], []>} : vector<8x32xf32>, vector<32x32xf32>, vector<8x32xf32> -> vector<8x32xf32>
    %264 = vector.broadcast %26 : vector<1x32xf32> to vector<8x32xf32>
    %265 = arith.addf %263, %264 : vector<8x32xf32>
    %cst_165 = arith.constant dense<0.000000e+00> : vector<8x32xf32>
    %266 = tpu.matmul %262, %22, %cst_165 {dimension_numbers = #tpu.dot_dimension_numbers<[1], [0], [0], [1], [0, 0, 1, 1], [], []>} : vector<8x32xf32>, vector<32x32xf32>, vector<8x32xf32> -> vector<8x32xf32>
    %267 = vector.broadcast %28 : vector<1x32xf32> to vector<8x32xf32>
    %268 = arith.addf %266, %267 : vector<8x32xf32>
    %cst_166 = arith.constant dense<0.000000e+00> : vector<8x32xf32>
    %269 = tpu.matmul %262, %24, %cst_166 {dimension_numbers = #tpu.dot_dimension_numbers<[1], [0], [0], [1], [0, 0, 1, 1], [], []>} : vector<8x32xf32>, vector<32x32xf32>, vector<8x32xf32> -> vector<8x32xf32>
    %270 = vector.broadcast %30 : vector<1x32xf32> to vector<8x32xf32>
    %271 = arith.addf %269, %270 : vector<8x32xf32>
    %cst_167 = arith.constant dense<0.000000e+00> : vector<8x32xf32>
    %272 = tpu.matmul %229, %14, %cst_167 {dimension_numbers = #tpu.dot_dimension_numbers<[1], [0], [0], [1], [0, 0, 1, 1], [], []>} : vector<8x32xf32>, vector<32x32xf32>, vector<8x32xf32> -> vector<8x32xf32>
    %cst_168 = arith.constant dense<0.000000e+00> : vector<8x32xf32>
    %273 = tpu.matmul %229, %16, %cst_168 {dimension_numbers = #tpu.dot_dimension_numbers<[1], [0], [0], [1], [0, 0, 1, 1], [], []>} : vector<8x32xf32>, vector<32x32xf32>, vector<8x32xf32> -> vector<8x32xf32>
    %cst_169 = arith.constant dense<0.000000e+00> : vector<8x32xf32>
    %274 = tpu.matmul %229, %18, %cst_169 {dimension_numbers = #tpu.dot_dimension_numbers<[1], [0], [0], [1], [0, 0, 1, 1], [], []>} : vector<8x32xf32>, vector<32x32xf32>, vector<8x32xf32> -> vector<8x32xf32>
    %275 = arith.addf %265, %272 : vector<8x32xf32>
    %276 = arith.addf %275, %6 : vector<8x32xf32>
    %277 = arith.negf %276 : vector<8x32xf32>
    %278 = math.exp %277 : vector<8x32xf32>
    %cst_170 = arith.constant 1.000000e+00 : f32
    %279 = vector.broadcast %cst_170 : f32 to vector<8x32xf32>
    %280 = arith.addf %279, %278 : vector<8x32xf32>
    %281 = arith.divf %279, %280 : vector<8x32xf32>
    %282 = arith.addf %268, %273 : vector<8x32xf32>
    %283 = arith.negf %282 : vector<8x32xf32>
    %284 = math.exp %283 : vector<8x32xf32>
    %cst_171 = arith.constant 1.000000e+00 : f32
    %285 = vector.broadcast %cst_171 : f32 to vector<8x32xf32>
    %286 = arith.addf %285, %284 : vector<8x32xf32>
    %287 = arith.divf %285, %286 : vector<8x32xf32>
    %288 = arith.mulf %281, %274 : vector<8x32xf32>
    %289 = arith.addf %271, %288 : vector<8x32xf32>
    %290 = math.tanh %289 : vector<8x32xf32>
    %cst_172 = arith.constant 1.000000e+00 : f32
    %291 = vector.broadcast %cst_172 : f32 to vector<8x32xf32>
    %292 = arith.subf %291, %287 : vector<8x32xf32>
    %293 = arith.mulf %292, %290 : vector<8x32xf32>
    %294 = arith.mulf %287, %229 : vector<8x32xf32>
    %295 = arith.addf %293, %294 : vector<8x32xf32>
    %c3_173 = arith.constant 3 : index
    %c0_174 = arith.constant 0 : index
    %c0_175 = arith.constant 0 : index
    %296 = vector.load %arg6[%c3_173, %c0_174, %c0_175] : memref<4x8x32xf32, #tpu.memory_space<vmem>>, vector<1x8x32xf32>
    %297 = vector.shape_cast %296 : vector<1x8x32xf32> to vector<8x32xf32>
    %298 = vector.shape_cast %295 : vector<8x32xf32> to vector<1x8x32xf32>
    tpu.vector_store %arg6[%c3_173, %c0_174, %c0_175], %298 {strides = array<i32>} : memref<4x8x32xf32, #tpu.memory_space<vmem>>, vector<1x8x32xf32>,
    %c0_176 = arith.constant 0 : index
    %c0_177 = arith.constant 0 : index
    %c0_178 = arith.constant 0 : index
    %299 = vector.load %arg8[%c0_176, %c0_177, %c0_178] : memref<2x8x32xf32, #tpu.memory_space<vmem>>, vector<1x8x32xf32>
    %300 = vector.shape_cast %299 : vector<1x8x32xf32> to vector<8x32xf32>
    %301 = vector.shape_cast %262 : vector<8x32xf32> to vector<1x8x32xf32>
    tpu.vector_store %arg8[%c0_176, %c0_177, %c0_178], %301 {strides = array<i32>} : memref<2x8x32xf32, #tpu.memory_space<vmem>>, vector<1x8x32xf32>,
    %c1_179 = arith.constant 1 : index
    %c0_180 = arith.constant 0 : index
    %c0_181 = arith.constant 0 : index
    %302 = vector.load %arg8[%c1_179, %c0_180, %c0_181] : memref<2x8x32xf32, #tpu.memory_space<vmem>>, vector<1x8x32xf32>
    %303 = vector.shape_cast %302 : vector<1x8x32xf32> to vector<8x32xf32>
    %304 = vector.shape_cast %295 : vector<8x32xf32> to vector<1x8x32xf32>
    tpu.vector_store %arg8[%c1_179, %c0_180, %c0_181], %304 {strides = array<i32>} : memref<2x8x32xf32, #tpu.memory_space<vmem>>, vector<1x8x32xf32>,
    %c1_i32 = arith.constant 1 : i32
    %305 = arith.cmpi eq, %arg0, %c1_i32 : i32
    %306 = arith.extui %305 : i1 to i32
    %c0_i32_182 = arith.constant 0 : i32
    %307 = arith.cmpi ne, %306, %c0_i32_182 : i32
    scf.if %307 {
      %c0_183 = arith.constant 0 : index
      %c0_184 = arith.constant 0 : index
      %c0_185 = arith.constant 0 : index
      %308 = vector.load %arg7[%c0_183, %c0_184, %c0_185] : memref<2x8x32xf32, #tpu.memory_space<vmem>>, vector<1x8x32xf32>
      %309 = vector.shape_cast %308 : vector<1x8x32xf32> to vector<8x32xf32>
      %310 = vector.shape_cast %262 : vector<8x32xf32> to vector<1x8x32xf32>
      tpu.vector_store %arg7[%c0_183, %c0_184, %c0_185], %310 {strides = array<i32>} : memref<2x8x32xf32, #tpu.memory_space<vmem>>, vector<1x8x32xf32>,
      %c1_186 = arith.constant 1 : index
      %c0_187 = arith.constant 0 : index
      %c0_188 = arith.constant 0 : index
      %311 = vector.load %arg7[%c1_186, %c0_187, %c0_188] : memref<2x8x32xf32, #tpu.memory_space<vmem>>, vector<1x8x32xf32>
      %312 = vector.shape_cast %311 : vector<1x8x32xf32> to vector<8x32xf32>
      %313 = vector.shape_cast %295 : vector<8x32xf32> to vector<1x8x32xf32>
      tpu.vector_store %arg7[%c1_186, %c0_187, %c0_188], %313 {strides = array<i32>} : memref<2x8x32xf32, #tpu.memory_space<vmem>>, vector<1x8x32xf32>,
    } else {
    }
    return
  }
  func.func @transform_0(%arg0: i32) -> (i32, i32, i32, i32) {
    %c0_i32 = arith.constant 0 : i32
    %c0_i32_0 = arith.constant 0 : i32
    %c0_i32_1 = arith.constant 0 : i32
    %c0_i32_2 = arith.constant 0 : i32
    return %arg0, %c0_i32, %c0_i32_0, %c0_i32_1 : i32, i32, i32, i32
  }
  func.func @transform_1(%arg0: i32) -> (i32, i32, i32) {
    %c0_i32 = arith.constant 0 : i32
    %c0_i32_0 = arith.constant 0 : i32
    %c0_i32_1 = arith.constant 0 : i32
    %c0_i32_2 = arith.constant 0 : i32
    return %c0_i32, %c0_i32_0, %c0_i32_1 : i32, i32, i32
  }
  func.func @transform_2(%arg0: i32) -> (i32, i32, i32, i32) {
    %c0_i32 = arith.constant 0 : i32
    %c0_i32_0 = arith.constant 0 : i32
    %c0_i32_1 = arith.constant 0 : i32
    %c0_i32_2 = arith.constant 0 : i32
    %c0_i32_3 = arith.constant 0 : i32
    return %c0_i32, %c0_i32_0, %c0_i32_1, %c0_i32_2 : i32, i32, i32, i32
  }
  func.func @transform_3(%arg0: i32) -> (i32, i32, i32, i32) {
    %c0_i32 = arith.constant 0 : i32
    %c0_i32_0 = arith.constant 0 : i32
    %c0_i32_1 = arith.constant 0 : i32
    %c0_i32_2 = arith.constant 0 : i32
    %c0_i32_3 = arith.constant 0 : i32
    return %c0_i32, %c0_i32_0, %c0_i32_1, %c0_i32_2 : i32, i32, i32, i32
  }
  func.func @transform_4(%arg0: i32) -> (i32, i32, i32, i32) {
    %c0_i32 = arith.constant 0 : i32
    %c0_i32_0 = arith.constant 0 : i32
    %c0_i32_1 = arith.constant 0 : i32
    %c0_i32_2 = arith.constant 0 : i32
    %c0_i32_3 = arith.constant 0 : i32
    return %c0_i32, %c0_i32_0, %c0_i32_1, %c0_i32_2 : i32, i32, i32, i32
  }
  func.func @transform_5(%arg0: i32) -> (i32, i32, i32) {
    %c0_i32 = arith.constant 0 : i32
    %c0_i32_0 = arith.constant 0 : i32
    %c0_i32_1 = arith.constant 0 : i32
    return %arg0, %c0_i32, %c0_i32_0 : i32, i32, i32
  }
  func.func @transform_6(%arg0: i32) -> (i32, i32, i32) {
    %c0_i32 = arith.constant 0 : i32
    %c0_i32_0 = arith.constant 0 : i32
    %c0_i32_1 = arith.constant 0 : i32
    %c0_i32_2 = arith.constant 0 : i32
    return %c0_i32, %c0_i32_0, %c0_i32_1 : i32, i32, i32
  }
}

</mosaic_0001>

<llo_original>
// kernel: tpu_custom_call.1
$region0: #{tpu_custom_call.1}
  #allocation0 [shape = 'u32[]', space=smem, size = 0x4, offset = 0x4, fixed_abs, tag = 'smem constant byte address 0x4 - core index']
  #allocation1 [shape = 'u32[72,128]{1,0:T(1,128)}', space=vmem, size = 0x9000, scoped, tag = 'internal scratch']
  #allocation2 [shape = 'f32[2,8,32]{2,1,0:T(8,128)}', space=vmem, size = 0x2000, scoped, tag = 'scratch operand']
  %s0 = inlined_call_operand.hbm [shape: f32[8,3,8,32], index: 0, kind: input, shape index: {}]
  %s1 = inlined_call_operand.hbm [shape: f32[2,8,32], index: 1, kind: input, shape index: {}]
  %s2 = inlined_call_operand.hbm [shape: f32[2,3,32,32], index: 2, kind: input, shape index: {}]
  %s3 = inlined_call_operand.hbm [shape: f32[2,3,1,32], index: 3, kind: input, shape index: {}]
  %s4 = inlined_call_operand.hbm [shape: f32[2,3,32,32], index: 4, kind: input, shape index: {}]
  %s5 = inlined_call_operand.hbm [shape: f32[8,8,32], index: 5, kind: output, shape index: {0}]
  %s6 = inlined_call_operand.hbm [shape: f32[2,8,32], index: 6, kind: output, shape index: {1}]
  %7 = xla_tuple %s5, %s6
  %s8 = sld [smem:[#allocation0]]
  $region89: #{tpu_custom_call.1} parent=0
    _
  %s10 = ssub.s32 1, %s8
  %s11 = scalar_select 0, %s10, %s8
  $region1: #{tpu_custom_call.1} parent=0
    #allocation3 [shape = 'u8[98304]{0}', space=vmem, size = 0x18000, scoped, tag = 'input window, operand 0']
    #allocation4 [shape = 's32[2]{0}', space=sflag, size = 0x8, scoped, tag = 'scoped memory for tpu_custom_call.1']
    #allocation5 [shape = 's32[2]{0}', space=sflag, size = 0x8, scoped, tag = 'scoped memory for tpu_custom_call.1']
    #allocation6 [shape = 'u8[8192]{0}', space=vmem, size = 0x2000, scoped, tag = 'input window, operand 1, single buffered']
    #allocation7 [shape = 's32[1]{0}', space=sflag, size = 0x4, scoped, tag = 'scoped memory for tpu_custom_call.1']
    #allocation8 [shape = 'u8[98304]{0}', space=vmem, size = 0x18000, scoped, tag = 'input window, operand 2, single buffered']
    #allocation9 [shape = 'u8[3072]{0}', space=vmem, size = 0xc00, scoped, tag = 'input window, operand 3, single buffered']
    #allocation10 [shape = 's32[1]{0}', space=sflag, size = 0x4, scoped, tag = 'scoped memory for tpu_custom_call.1']
    #allocation11 [shape = 'u8[98304]{0}', space=vmem, size = 0x18000, scoped, tag = 'input window, operand 4, single buffered']
    #allocation12 [shape = 'u8[32768]{0}', space=vmem, size = 0x8000, scoped, tag = 'output window, operand 0']
    #allocation13 [shape = 'u8[8192]{0}', space=vmem, size = 0x2000, scoped, tag = 'output window, operand 1, single buffered']
    #allocation14 [shape = 's32[1]{0}', space=sflag, size = 0x4, scoped, tag = 'scoped memory for tpu_custom_call.1']
    %12 = vsyncpa [#allocation4], 0
    %s13 = scalar_lea.sflag [#allocation4], 1
    %14 = vsyncpa %s13, 0
    %15 = vsyncpa [#allocation7], 0
    %16 = vsyncpa [#allocation10], 0
    %17 = vsyncpa [#allocation5], 0
    %s18 = scalar_lea.sflag [#allocation5], 1
    %19 = vsyncpa %s18, 0
    %20 = vsyncpa [#allocation14], 0
    loop: start=0, step=1, limit=4
    $region2: #{tpu_custom_call.1} parent=1 // loop_pre_header
      _
    $region3: #{tpu_custom_call.1} parent=1 // loop_header
      %s22 = sphi 0, %s26
      %p23 = scmp.ge.s32.totalorder %s22, 4
      %s32 = sphi 0, %s34
      %s35 = sphi 0, %s32
      %s36 = sphi 0, %s35
      %s52 = sphi 0, %s36
      %s56 = sphi 0, %s56
      %s58 = sphi 0, %s56
      %s59 = sphi 0, %s58
      %s73 = sphi 0, %s59
      %s77 = sphi 0, %s77
      %s79 = sphi 0, %s77
      %s80 = sphi 0, %s79
      %s94 = sphi 0, %s80
      %s98 = sphi 0, %s98
      %s100 = sphi 0, %s98
      %s101 = sphi 0, %s100
      %s115 = sphi 0, %s101
      %s119 = sphi 0, %s119
      %s121 = sphi 0, %s119
      %s122 = sphi 0, %s121
      %s136 = sphi 0, %s122
      %s142 = sphi 0, %s144
      %s145 = sphi 0, %s142
      %s146 = sphi 0, %s145
      %s162 = sphi 0, %s146
      %s166 = sphi 0, %s166
      %s168 = sphi 0, %s166
      %s169 = sphi 0, %s168
      %s183 = sphi 0, %s169
    $region4: #{tpu_custom_call.1} parent=1 // loop_header_branch
      %25 = sbr.rel (%p23) target = $region8
    $region5: #{tpu_custom_call.1} parent=1 // loop_body
      %s27 = ssub.s32 %s22, 1
      %s28 = ssub.s32 %s22, 2
      %s29 = sadd.s32 %s22, 1
      %s30 = ssub.s32 %s22, %s29
      %p31 = scmp.eq.s32.totalorder %s30, 0
      %s33 = sadd.s32 %s32, 1
      %s34 = scalar_select %p31, %s32, %s33
      %p37 = pneg %p31
      %p38 = scmp.eq.s32.totalorder %s22, 1
      %p39 = por %p37, %p38
      %p40 = scmp.ne.s32.totalorder %s32, %s35
      %p41 = scmp.eq.s32.totalorder %s22, 0
      %p42 = por %p40, %p41
      %p43 = scmp.ne.s32.totalorder %s32, %s35
      %p44 = scmp.eq.s32.totalorder %s27, 1
      %p45 = por %p43, %p44
      %p46 = scmp.ne.s32.totalorder %s35, %s36
      %p47 = scmp.eq.s32.totalorder %s27, 0
      %p48 = por %p46, %p47
      %p49 = scmp.ne.s32.totalorder %s35, %s36
      %p50 = scmp.eq.s32.totalorder %s28, 1
      %p51 = por %p49, %p50
      %p53 = scmp.ne.s32.totalorder %s36, %s52
      %p54 = scmp.eq.s32.totalorder %s28, 0
      %p55 = por %p53, %p54
      %s57 = sadd.s32 %s56, 1
      %p60 = scmp.eq.s32.totalorder %s22, 1
      %p61 = scmp.ne.s32.totalorder %s56, %s58
      %p62 = scmp.eq.s32.totalorder %s22, 0
      %p63 = por %p61, %p62
      %p64 = scmp.ne.s32.totalorder %s56, %s58
      %p65 = scmp.eq.s32.totalorder %s27, 1
      %p66 = por %p64, %p65
      %p67 = scmp.ne.s32.totalorder %s58, %s59
      %p68 = scmp.eq.s32.totalorder %s27, 0
      %p69 = por %p67, %p68
      %p70 = scmp.ne.s32.totalorder %s58, %s59
      %p71 = scmp.eq.s32.totalorder %s28, 1
      %p72 = por %p70, %p71
      %p74 = scmp.ne.s32.totalorder %s59, %s73
      %p75 = scmp.eq.s32.totalorder %s28, 0
      %p76 = por %p74, %p75
      %s78 = sadd.s32 %s77, 1
      %p81 = scmp.eq.s32.totalorder %s22, 1
      %p82 = scmp.ne.s32.totalorder %s77, %s79
      %p83 = scmp.eq.s32.totalorder %s22, 0
      %p84 = por %p82, %p83
      %p85 = scmp.ne.s32.totalorder %s77, %s79
      %p86 = scmp.eq.s32.totalorder %s27, 1
      %p87 = por %p85, %p86
      %p88 = scmp.ne.s32.totalorder %s79, %s80
      %p89 = scmp.eq.s32.totalorder %s27, 0
      %p90 = por %p88, %p89
      %p91 = scmp.ne.s32.totalorder %s79, %s80
      %p92 = scmp.eq.s32.totalorder %s28, 1
      %p93 = por %p91, %p92
      %p95 = scmp.ne.s32.totalorder %s80, %s94
      %p96 = scmp.eq.s32.totalorder %s28, 0
      %p97 = por %p95, %p96
      %s99 = sadd.s32 %s98, 1
      %p102 = scmp.eq.s32.totalorder %s22, 1
      %p103 = scmp.ne.s32.totalorder %s98, %s100
      %p104 = scmp.eq.s32.totalorder %s22, 0
      %p105 = por %p103, %p104
      %p106 = scmp.ne.s32.totalorder %s98, %s100
      %p107 = scmp.eq.s32.totalorder %s27, 1
      %p108 = por %p106, %p107
      %p109 = scmp.ne.s32.totalorder %s100, %s101
      %p110 = scmp.eq.s32.totalorder %s27, 0
      %p111 = por %p109, %p110
      %p112 = scmp.ne.s32.totalorder %s100, %s101
      %p113 = scmp.eq.s32.totalorder %s28, 1
      %p114 = por %p112, %p113
      %p116 = scmp.ne.s32.totalorder %s101, %s115
      %p117 = scmp.eq.s32.totalorder %s28, 0
      %p118 = por %p116, %p117
      %s120 = sadd.s32 %s119, 1
      %p123 = scmp.eq.s32.totalorder %s22, 1
      %p124 = scmp.ne.s32.totalorder %s119, %s121
      %p125 = scmp.eq.s32.totalorder %s22, 0
      %p126 = por %p124, %p125
      %p127 = scmp.ne.s32.totalorder %s119, %s121
      %p128 = scmp.eq.s32.totalorder %s27, 1
      %p129 = por %p127, %p128
      %p130 = scmp.ne.s32.totalorder %s121, %s122
      %p131 = scmp.eq.s32.totalorder %s27, 0
      %p132 = por %p130, %p131
      %p133 = scmp.ne.s32.totalorder %s121, %s122
      %p134 = scmp.eq.s32.totalorder %s28, 1
      %p135 = por %p133, %p134
      %p137 = scmp.ne.s32.totalorder %s122, %s136
      %p138 = scmp.eq.s32.totalorder %s28, 0
      %p139 = por %p137, %p138
      %s140 = ssub.s32 %s22, %s29
      %p141 = scmp.eq.s32.totalorder %s140, 0
      %s143 = sadd.s32 %s142, 1
      %s144 = scalar_select %p141, %s142, %s143
      %p147 = pneg %p141
      %p148 = scmp.eq.s32.totalorder %s22, 1
      %p149 = por %p147, %p148
      %p150 = scmp.ne.s32.totalorder %s142, %s145
      %p151 = scmp.eq.s32.totalorder %s22, 0
      %p152 = por %p150, %p151
      %p153 = scmp.ne.s32.totalorder %s142, %s145
      %p154 = scmp.eq.s32.totalorder %s27, 1
      %p155 = por %p153, %p154
      %p156 = scmp.ne.s32.totalorder %s145, %s146
      %p157 = scmp.eq.s32.totalorder %s27, 0
      %p158 = por %p156, %p157
      %p159 = scmp.ne.s32.totalorder %s145, %s146
      %p160 = scmp.eq.s32.totalorder %s28, 1
      %p161 = por %p159, %p160
      %p163 = scmp.ne.s32.totalorder %s146, %s162
      %p164 = scmp.eq.s32.totalorder %s28, 0
      %p165 = por %p163, %p164
      %s167 = sadd.s32 %s166, 1
      %p170 = scmp.eq.s32.totalorder %s22, 1
      %p171 = scmp.ne.s32.totalorder %s166, %s168
      %p172 = scmp.eq.s32.totalorder %s22, 0
      %p173 = por %p171, %p172
      %p174 = scmp.ne.s32.totalorder %s166, %s168
      %p175 = scmp.eq.s32.totalorder %s27, 1
      %p176 = por %p174, %p175
      %p177 = scmp.ne.s32.totalorder %s168, %s169
      %p178 = scmp.eq.s32.totalorder %s27, 0
      %p179 = por %p177, %p178
      %p180 = scmp.ne.s32.totalorder %s168, %s169
      %p181 = scmp.eq.s32.totalorder %s28, 1
      %p182 = por %p180, %p181
      %p184 = scmp.ne.s32.totalorder %s169, %s183
      %p185 = scmp.eq.s32.totalorder %s28, 0
      %p186 = por %p184, %p185
      %p187 = scmp.le.s32.totalorder 1, %s22
      %p188 = scmp.lt.s32.totalorder %s22, 3
      %p189 = pnand %p187, %p188
      %p190 = pneg %p189
      // Predicated region
      $region9: #{tpu_custom_call.1} parent=5 // pred_check
        _
      $region10: #{tpu_custom_call.1} parent=5 // pred_check_branch
        %192 = sbr.rel (%p189) target = $region12
      $region11: #{tpu_custom_call.1} parent=5 // pred_region
        %s193 = ssub.s32 %s22, 1
        // Predicated region
        $region13: #{tpu_custom_call.1} parent=11 // pred_check
          %p194 = pneg %p69
        $region14: #{tpu_custom_call.1} parent=11 // pred_check_branch
          %196 = sbr.rel (%p194) target = $region16
        $region15: #{tpu_custom_call.1} parent=11 // pred_region
          %198 = vsyncadd [#allocation7], 0
          %s199 = sshll.u32 %s1, 4
          %s200 = int_to_ptr.hbm [resolvable:$true] %s199
          %s201 = sshll.u32 [#allocation6], 4
          %s202 = int_to_ptr.vmem [resolvable:$true] %s201
          %207 = dma.hbm_to_vmem [thread:$0]  %s200, 256, %s202, [#allocation7], 128, 128, 8
        $region16: #{tpu_custom_call.1} parent=11 // pred_fallthru
          _
        // Predicated region
        $region17: #{tpu_custom_call.1} parent=11 // pred_check
          %p208 = pneg %p90
        $region18: #{tpu_custom_call.1} parent=11 // pred_check_branch
          %210 = sbr.rel (%p208) target = $region20
        $region19: #{tpu_custom_call.1} parent=11 // pred_region
          %212 = vsyncadd [#allocation7], 0
          %s213 = sshll.u32 %s2, 4
          %s214 = int_to_ptr.hbm [resolvable:$true] %s213
          %s215 = sshll.u32 [#allocation8], 4
          %s216 = int_to_ptr.vmem [resolvable:$true] %s215
          %221 = dma.hbm_to_vmem [thread:$0]  %s214, 3072, %s216, [#allocation7], 128, 128, 8
        $region20: #{tpu_custom_call.1} parent=11 // pred_fallthru
          _
        // Predicated region
        $region21: #{tpu_custom_call.1} parent=11 // pred_check
          %p222 = pneg %p111
        $region22: #{tpu_custom_call.1} parent=11 // pred_check_branch
          %224 = sbr.rel (%p222) target = $region24
        $region23: #{tpu_custom_call.1} parent=11 // pred_region
          %226 = vsyncadd [#allocation10], 0
          %s227 = sshll.u32 %s3, 4
          %s228 = int_to_ptr.hbm [resolvable:$true] %s227
          %s229 = sshll.u32 [#allocation9], 4
          %s230 = int_to_ptr.vmem [resolvable:$true] %s229
          %235 = dma.hbm_to_vmem [thread:$0]  %s228, 96, %s230, [#allocation10], 16, 16, 1
        $region24: #{tpu_custom_call.1} parent=11 // pred_fallthru
          _
        // Predicated region
        $region25: #{tpu_custom_call.1} parent=11 // pred_check
          %p236 = pneg %p132
        $region26: #{tpu_custom_call.1} parent=11 // pred_check_branch
          %238 = sbr.rel (%p236) target = $region28
        $region27: #{tpu_custom_call.1} parent=11 // pred_region
          %240 = vsyncadd [#allocation10], 0
          %s241 = sshll.u32 %s4, 4
          %s242 = int_to_ptr.hbm [resolvable:$true] %s241
          %s243 = sshll.u32 [#allocation11], 4
          %s244 = int_to_ptr.vmem [resolvable:$true] %s243
          %249 = dma.hbm_to_vmem [thread:$0]  %s242, 3072, %s244, [#allocation10], 128, 128, 8
        $region28: #{tpu_custom_call.1} parent=11 // pred_fallthru
          _
      $region12: #{tpu_custom_call.1} parent=5 // pred_fallthru
        _
      %p250 = scmp.lt.s32.totalorder %s22, 2
      // Predicated region
      $region29: #{tpu_custom_call.1} parent=5 // pred_check
        %p251 = pneg %p250
      $region30: #{tpu_custom_call.1} parent=5 // pred_check_branch
        %253 = sbr.rel (%p251) target = $region32
      $region31: #{tpu_custom_call.1} parent=5 // pred_region
        // Predicated region
        $region33: #{tpu_custom_call.1} parent=31 // pred_check
          %p254 = pneg %p42
        $region34: #{tpu_custom_call.1} parent=31 // pred_check_branch
          %256 = sbr.rel (%p254) target = $region36
        $region35: #{tpu_custom_call.1} parent=31 // pred_region
          %s257 = sand.u32 %s32, 1
          %s258 = scalar_lea.sflag [#allocation4], %s257
          %s259 = sand.u32 %s32, 1
          %s260 = smul.addr %s259, 96
          %s261 = scalar_lea.vmem [#allocation3], %s260
          %s262 = smul.u32 4, %s22
          %264 = vsyncadd %s258, 0
          %s265 = smul.addr %s262, 3
          %s266 = smul.addr %s265, 8
          %s267 = scalar_lea.hbm %s0, %s266
          %s268 = sshll.u32 %s267, 4
          %s269 = int_to_ptr.hbm [resolvable:$true] %s268
          %s270 = sshll.u32 %s261, 4
          %s271 = int_to_ptr.vmem [resolvable:$true] %s270
          %276 = dma.hbm_to_vmem [thread:$0]  %s269, 1536, %s271, %s258, 128, 128, 8
        $region36: #{tpu_custom_call.1} parent=31 // pred_fallthru
          _
      $region32: #{tpu_custom_call.1} parent=5 // pred_fallthru
        _
      %p277 = scmp.le.s32.totalorder 1, %s22
      %p278 = scmp.lt.s32.totalorder %s22, 3
      %p279 = pnand %p277, %p278
      %p280 = pneg %p279
      // Predicated region
      $region37: #{tpu_custom_call.1} parent=5 // pred_check
        _
      $region38: #{tpu_custom_call.1} parent=5 // pred_check_branch
        %282 = sbr.rel (%p279) target = $region40
      $region39: #{tpu_custom_call.1} parent=5 // pred_region
        %s283 = ssub.s32 %s22, 1
        %s284 = sand.u32 %s35, 1
        %s285 = scalar_lea.sflag [#allocation4], %s284
        %s286 = sand.u32 %s35, 1
        %s287 = smul.addr %s286, 96
        %s288 = scalar_lea.vmem [#allocation3], %s287
        // Predicated region
        $region41: #{tpu_custom_call.1} parent=39 // pred_check
          %p289 = pneg %p48
        $region42: #{tpu_custom_call.1} parent=39 // pred_check_branch
          %291 = sbr.rel (%p289) target = $region44
        $region43: #{tpu_custom_call.1} parent=39 // pred_region
          %293 = dma.done %s285, 1536
        $region44: #{tpu_custom_call.1} parent=39 // pred_fallthru
          _
        // Predicated region
        $region45: #{tpu_custom_call.1} parent=39 // pred_check
          %p294 = pneg %p69
        $region46: #{tpu_custom_call.1} parent=39 // pred_check_branch
          %296 = sbr.rel (%p294) target = $region48
        $region47: #{tpu_custom_call.1} parent=39 // pred_region
          %298 = dma.done [#allocation7], 256
        $region48: #{tpu_custom_call.1} parent=39 // pred_fallthru
          _
        // Predicated region
        $region49: #{tpu_custom_call.1} parent=39 // pred_check
          %p299 = pneg %p90
        $region50: #{tpu_custom_call.1} parent=39 // pred_check_branch
          %301 = sbr.rel (%p299) target = $region52
        $region51: #{tpu_custom_call.1} parent=39 // pred_region
          %303 = dma.done [#allocation7], 3072
        $region52: #{tpu_custom_call.1} parent=39 // pred_fallthru
          _
        // Predicated region
        $region53: #{tpu_custom_call.1} parent=39 // pred_check
          %p304 = pneg %p111
        $region54: #{tpu_custom_call.1} parent=39 // pred_check_branch
          %306 = sbr.rel (%p304) target = $region56
        $region55: #{tpu_custom_call.1} parent=39 // pred_region
          %308 = dma.done [#allocation10], 96
        $region56: #{tpu_custom_call.1} parent=39 // pred_fallthru
          _
        // Predicated region
        $region57: #{tpu_custom_call.1} parent=39 // pred_check
          %p309 = pneg %p132
        $region58: #{tpu_custom_call.1} parent=39 // pred_check_branch
          %311 = sbr.rel (%p309) target = $region60
        $region59: #{tpu_custom_call.1} parent=39 // pred_region
          %313 = dma.done [#allocation10], 3072
        $region60: #{tpu_custom_call.1} parent=39 // pred_fallthru
          _
        %s314 = sand.u32 %s35, 1
        %s315 = scalar_lea.sflag [#allocation4], %s314
        %s316 = sand.u32 %s35, 1
        %s317 = smul.addr %s316, 96
        %s318 = scalar_lea.vmem [#allocation3], %s317
        %p319 = pneg %p48
        %p320 = pneg %p45
        %p321 = pneg %p69
        %p322 = pneg %p66
        %p323 = pneg %p90
        %p324 = pneg %p87
        %p325 = pneg %p111
        %p326 = pneg %p108
        %p327 = pneg %p132
        %p328 = pneg %p129
        %p329 = pneg %p158
        %p330 = pneg %p155
        %s331 = sand.u32 %s145, 1
        %s332 = scalar_lea.sflag [#allocation5], %s331
        %s333 = sand.u32 %s145, 1
        %s334 = smul.addr %s333, 32
        %s335 = scalar_lea.vmem [#allocation12], %s334
        %p336 = pneg %p179
        %p337 = pneg %p176
        %s338 = smul.u32 4, %s27
        %s339 = smul.u32 4, %s27
        %p340 = scmp.eq.s32.totalorder %s27, 0
        // Predicated region
        $region61: #{tpu_custom_call.1} parent=39 // pred_check
          %p341 = pneg %p340
        $region62: #{tpu_custom_call.1} parent=39 // pred_check_branch
          %343 = sbr.rel (%p341) target = $region64
        $region63: #{tpu_custom_call.1} parent=39 // pred_region
          %vm344 = vcmask 261120
          %345 = vst.msk [vmem:[#allocation2] sm:$0xff] %vm344, 0.0
          %346 = vst.msk [vmem:[#allocation2 + $0x8] sm:$0xff] %vm344, 0.0
        $region64: #{tpu_custom_call.1} parent=39 // pred_fallthru
          _
        %v347 = vld [vmem:[#allocation6] sm:$0xff]
        %s348 = scalar_lea.vmem [#allocation6], 8
        %v349 = vld [vmem:[%s348] sm:$0xff]
        %v350 = vld [vmem:[#allocation11] sm:$0xff]
        %v351 = vld [vmem:[#allocation11 + $0x8] sm:$0xff]
        %v352 = vld [vmem:[#allocation11 + $0x10] sm:$0xff]
        %v353 = vld [vmem:[#allocation11 + $0x18] sm:$0xff]
        %s354 = scalar_lea.vmem [#allocation11], 32
        %v355 = vld [vmem:[%s354] sm:$0xff]
        %v356 = vld [vmem:[%s354 + $0x8] sm:$0xff]
        %v357 = vld [vmem:[%s354 + $0x10] sm:$0xff]
        %v358 = vld [vmem:[%s354 + $0x18] sm:$0xff]
        %s359 = scalar_lea.vmem [#allocation11], 64
        %v360 = vld [vmem:[%s359] sm:$0xff]
        %v361 = vld [vmem:[%s359 + $0x8] sm:$0xff]
        %v362 = vld [vmem:[%s359 + $0x10] sm:$0xff]
        %v363 = vld [vmem:[%s359 + $0x18] sm:$0xff]
        %s364 = scalar_lea.vmem [#allocation11], 96
        %v365 = vld [vmem:[%s364] sm:$0xff]
        %v366 = vld [vmem:[%s364 + $0x8] sm:$0xff]
        %v367 = vld [vmem:[%s364 + $0x10] sm:$0xff]
        %v368 = vld [vmem:[%s364 + $0x18] sm:$0xff]
        %s369 = scalar_lea.vmem [#allocation11], 128
        %v370 = vld [vmem:[%s369] sm:$0xff]
        %v371 = vld [vmem:[%s369 + $0x8] sm:$0xff]
        %v372 = vld [vmem:[%s369 + $0x10] sm:$0xff]
        %v373 = vld [vmem:[%s369 + $0x18] sm:$0xff]
        %s374 = scalar_lea.vmem [#allocation11], 160
        %v375 = vld [vmem:[%s374] sm:$0xff]
        %v376 = vld [vmem:[%s374 + $0x8] sm:$0xff]
        %v377 = vld [vmem:[%s374 + $0x10] sm:$0xff]
        %v378 = vld [vmem:[%s374 + $0x18] sm:$0xff]
        %s379 = scalar_lea.vmem [#allocation8], 96
        %v380 = vld [vmem:[%s379] sm:$0xff]
        %v381 = vld [vmem:[%s379 + $0x8] sm:$0xff]
        %v382 = vld [vmem:[%s379 + $0x10] sm:$0xff]
        %v383 = vld [vmem:[%s379 + $0x18] sm:$0xff]
        %s384 = scalar_lea.vmem [#allocation8], 128
        %v385 = vld [vmem:[%s384] sm:$0xff]
        %v386 = vld [vmem:[%s384 + $0x8] sm:$0xff]
        %v387 = vld [vmem:[%s384 + $0x10] sm:$0xff]
        %v388 = vld [vmem:[%s384 + $0x18] sm:$0xff]
        %s389 = scalar_lea.vmem [#allocation8], 160
        %v390 = vld [vmem:[%s389] sm:$0xff]
        %v391 = vld [vmem:[%s389 + $0x8] sm:$0xff]
        %v392 = vld [vmem:[%s389 + $0x10] sm:$0xff]
        %v393 = vld [vmem:[%s389 + $0x18] sm:$0xff]
        %s394 = scalar_lea.vmem [#allocation9], 3
        %v395 = vld [vmem:[%s394] sm:$0x1]
        %s396 = scalar_lea.vmem [#allocation9], 4
        %v397 = vld [vmem:[%s396] sm:$0x1]
        %s398 = scalar_lea.vmem [#allocation9], 5
        %v399 = vld [vmem:[%s398] sm:$0x1]
        %v400 = vld [vmem:[#allocation2] sm:$0xff]
        %s401 = scalar_lea.vmem [#allocation2], 8
        %v402 = vld [vmem:[%s401] sm:$0xff]
        %v403 = vld [vmem:[%s288] sm:$0xff]
        %s404 = scalar_lea.vmem %s288, 8 [#allocation3]
        %v405 = vld [vmem:[%s404] sm:$0xff]
        %s406 = scalar_lea.vmem %s288, 16 [#allocation3]
        %v407 = vld [vmem:[%s406] sm:$0xff]
        %vm408 = vcmask 261120
        %v410 = vsel %vm408, %v400, 0
        %412 = vmatpush.msra.mxu0 0.0
        %413 = vmatpush.msra.mxu0 0.0
        %414 = vmatpush.msra.mxu0 0.0
        %415 = vmatpush.msra.mxu0 0.0
        %416 = vmatpush.msra.mxu0 0.0
        %417 = vmatpush.msra.mxu0 0.0
        %418 = vmatpush.msra.mxu0 0.0
        %419 = vmatpush.msra.mxu0 0.0
        %420 = vmatpush.msra.mxu0 0.0
        %421 = vmatpush.msra.mxu0 0.0
        %422 = vmatpush.msra.mxu0 0.0
        %423 = vmatpush.msra.mxu0 0.0
        %424 = vmatpush.msra.mxu0 %v353
        %425 = vmatpush.msra.mxu0 %v352
        %426 = vmatpush.msra.mxu0 %v351
        %427 = vmatpush.msra.mxu0 %v350
        %428 = vmatmul.f32.gmra.mxu0 %v410
        %v429 = vpop.f32.mrf.mxu0
        %v430 = vadd.f32 0.0, %v429
        %431 = vdwg.mxu0
        %432 = vmatpush.msra.mxu0 0.0
        %433 = vmatpush.msra.mxu0 0.0
        %434 = vmatpush.msra.mxu0 0.0
        %435 = vmatpush.msra.mxu0 0.0
        %436 = vmatpush.msra.mxu0 0.0
        %437 = vmatpush.msra.mxu0 0.0
        %438 = vmatpush.msra.mxu0 0.0
        %439 = vmatpush.msra.mxu0 0.0
        %440 = vmatpush.msra.mxu0 0.0
        %441 = vmatpush.msra.mxu0 0.0
        %442 = vmatpush.msra.mxu0 0.0
        %443 = vmatpush.msra.mxu0 0.0
        %444 = vmatpush.msra.mxu0 %v358
        %445 = vmatpush.msra.mxu0 %v357
        %446 = vmatpush.msra.mxu0 %v356
        %447 = vmatpush.msra.mxu0 %v355
        %448 = vmatmul.f32.gmra.mxu0 %v410
        %v449 = vpop.f32.mrf.mxu0
        %v450 = vadd.f32 0.0, %v449
        %451 = vdwg.mxu0
        %452 = vmatpush.msra.mxu0 0.0
        %453 = vmatpush.msra.mxu0 0.0
        %454 = vmatpush.msra.mxu0 0.0
        %455 = vmatpush.msra.mxu0 0.0
        %456 = vmatpush.msra.mxu0 0.0
        %457 = vmatpush.msra.mxu0 0.0
        %458 = vmatpush.msra.mxu0 0.0
        %459 = vmatpush.msra.mxu0 0.0
        %460 = vmatpush.msra.mxu0 0.0
        %461 = vmatpush.msra.mxu0 0.0
        %462 = vmatpush.msra.mxu0 0.0
        %463 = vmatpush.msra.mxu0 0.0
        %464 = vmatpush.msra.mxu0 %v363
        %465 = vmatpush.msra.mxu0 %v362
        %466 = vmatpush.msra.mxu0 %v361
        %467 = vmatpush.msra.mxu0 %v360
        %468 = vmatmul.f32.gmra.mxu0 %v410
        %v469 = vpop.f32.mrf.mxu0
        %v470 = vadd.f32 0.0, %v469
        %471 = vdwg.mxu0
        %v472 = vadd.f32 %v403, %v430
        %v473 = vadd.f32 %v472, %v347
        %v474 = vxor.u32 %v473, 2147483648
        %v475 = vmul.f32 %v474, 1.442695
        %v476 = vpow.pop %v475
        %v477 = vadd.f32 %v476, 1.0
        %v478 = vrcp.pop %v477
        %v479 = vmul.f32 %v477, %v478
        %v480 = vsub.f32 1.0, %v479
        %v481 = vmul.f32 %v478, %v480
        %v482 = vadd.f32 %v478, %v481
        %vm483 = vweird.f32 %v477
        %vm484 = vweird.f32 %v478
        %vm485 = vmor %vm483, %vm484
        %v486 = vsel %vm485, %v478, %v482
        %v487 = vand.u32 2147483647, %v477
        %vm488 = vcmp.eq.f32.partialorder %v487, 8.507059e+37
        %v489 = vand.u32 %v477, 2147483648
        %v490 = vor.u32 1.1754944e-38, %v489
        %v491 = vsel %vm488, %v490, %v486
        %v492 = vmul.f32 1.0, %v491
        %v493 = vadd.f32 %v405, %v450
        %v494 = vxor.u32 %v493, 2147483648
        %v495 = vmul.f32 %v494, 1.442695
        %v496 = vpow.pop %v495
        %v497 = vadd.f32 %v496, 1.0
        %v498 = vrcp.pop %v497
        %v499 = vmul.f32 %v497, %v498
        %v500 = vsub.f32 1.0, %v499
        %v501 = vmul.f32 %v498, %v500
        %v502 = vadd.f32 %v498, %v501
        %vm503 = vweird.f32 %v497
        %vm504 = vweird.f32 %v498
        %vm505 = vmor %vm503, %vm504
        %v506 = vsel %vm505, %v498, %v502
        %v507 = vand.u32 2147483647, %v497
        %vm508 = vcmp.eq.f32.partialorder %v507, 8.507059e+37
        %v509 = vand.u32 %v497, 2147483648
        %v510 = vor.u32 1.1754944e-38, %v509
        %v511 = vsel %vm508, %v510, %v506
        %v512 = vmul.f32 1.0, %v511
        %v513 = vmul.f32 %v492, %v470
        %v514 = vadd.f32 %v407, %v513
        %v515 = vtanh.pop %v514
        %v516 = vsub.f32 1.0, %v512
        %v517 = vmul.f32 %v516, %v515
        %v518 = vmul.f32 %v512, %v400
        %v519 = vadd.f32 %v517, %v518
        %v521 = vperm.slane %v395, 0
        %v524 = vsel %vm408, %v519, 0
        %526 = vmatpush.msra.mxu0 0.0
        %527 = vmatpush.msra.mxu0 0.0
        %528 = vmatpush.msra.mxu0 0.0
        %529 = vmatpush.msra.mxu0 0.0
        %530 = vmatpush.msra.mxu0 0.0
        %531 = vmatpush.msra.mxu0 0.0
        %532 = vmatpush.msra.mxu0 0.0
        %533 = vmatpush.msra.mxu0 0.0
        %534 = vmatpush.msra.mxu0 0.0
        %535 = vmatpush.msra.mxu0 0.0
        %536 = vmatpush.msra.mxu0 0.0
        %537 = vmatpush.msra.mxu0 0.0
        %538 = vmatpush.msra.mxu0 %v383
        %539 = vmatpush.msra.mxu0 %v382
        %540 = vmatpush.msra.mxu0 %v381
        %541 = vmatpush.msra.mxu0 %v380
        %542 = vmatmul.f32.gmra.mxu0 %v524
        %v543 = vpop.f32.mrf.mxu0
        %v544 = vadd.f32 %v521, %v543
        %545 = vdwg.mxu0
        %v547 = vperm.slane %v397, 0
        %549 = vmatpush.msra.mxu0 0.0
        %550 = vmatpush.msra.mxu0 0.0
        %551 = vmatpush.msra.mxu0 0.0
        %552 = vmatpush.msra.mxu0 0.0
        %553 = vmatpush.msra.mxu0 0.0
        %554 = vmatpush.msra.mxu0 0.0
        %555 = vmatpush.msra.mxu0 0.0
        %556 = vmatpush.msra.mxu0 0.0
        %557 = vmatpush.msra.mxu0 0.0
        %558 = vmatpush.msra.mxu0 0.0
        %559 = vmatpush.msra.mxu0 0.0
        %560 = vmatpush.msra.mxu0 0.0
        %561 = vmatpush.msra.mxu0 %v388
        %562 = vmatpush.msra.mxu0 %v387
        %563 = vmatpush.msra.mxu0 %v386
        %564 = vmatpush.msra.mxu0 %v385
        %565 = vmatmul.f32.gmra.mxu0 %v524
        %v566 = vpop.f32.mrf.mxu0
        %v567 = vadd.f32 %v547, %v566
        %568 = vdwg.mxu0
        %v570 = vperm.slane %v399, 0
        %572 = vmatpush.msra.mxu0 0.0
        %573 = vmatpush.msra.mxu0 0.0
        %574 = vmatpush.msra.mxu0 0.0
        %575 = vmatpush.msra.mxu0 0.0
        %576 = vmatpush.msra.mxu0 0.0
        %577 = vmatpush.msra.mxu0 0.0
        %578 = vmatpush.msra.mxu0 0.0
        %579 = vmatpush.msra.mxu0 0.0
        %580 = vmatpush.msra.mxu0 0.0
        %581 = vmatpush.msra.mxu0 0.0
        %582 = vmatpush.msra.mxu0 0.0
        %583 = vmatpush.msra.mxu0 0.0
        %584 = vmatpush.msra.mxu0 %v393
        %585 = vmatpush.msra.mxu0 %v392
        %586 = vmatpush.msra.mxu0 %v391
        %587 = vmatpush.msra.mxu0 %v390
        %588 = vmatmul.f32.gmra.mxu0 %v524
        %v589 = vpop.f32.mrf.mxu0
        %v590 = vadd.f32 %v570, %v589
        %591 = vdwg.mxu0
        %v593 = vsel %vm408, %v402, 0
        %595 = vmatpush.msra.mxu0 0.0
        %596 = vmatpush.msra.mxu0 0.0
        %597 = vmatpush.msra.mxu0 0.0
        %598 = vmatpush.msra.mxu0 0.0
        %599 = vmatpush.msra.mxu0 0.0
        %600 = vmatpush.msra.mxu0 0.0
        %601 = vmatpush.msra.mxu0 0.0
        %602 = vmatpush.msra.mxu0 0.0
        %603 = vmatpush.msra.mxu0 0.0
        %604 = vmatpush.msra.mxu0 0.0
        %605 = vmatpush.msra.mxu0 0.0
        %606 = vmatpush.msra.mxu0 0.0
        %607 = vmatpush.msra.mxu0 %v368
        %608 = vmatpush.msra.mxu0 %v367
        %609 = vmatpush.msra.mxu0 %v366
        %610 = vmatpush.msra.mxu0 %v365
        %611 = vmatmul.f32.gmra.mxu0 %v593
        %v612 = vpop.f32.mrf.mxu0
        %v613 = vadd.f32 0.0, %v612
        %614 = vdwg.mxu0
        %615 = vmatpush.msra.mxu0 0.0
        %616 = vmatpush.msra.mxu0 0.0
        %617 = vmatpush.msra.mxu0 0.0
        %618 = vmatpush.msra.mxu0 0.0
        %619 = vmatpush.msra.mxu0 0.0
        %620 = vmatpush.msra.mxu0 0.0
        %621 = vmatpush.msra.mxu0 0.0
        %622 = vmatpush.msra.mxu0 0.0
        %623 = vmatpush.msra.mxu0 0.0
        %624 = vmatpush.msra.mxu0 0.0
        %625 = vmatpush.msra.mxu0 0.0
        %626 = vmatpush.msra.mxu0 0.0
        %627 = vmatpush.msra.mxu0 %v373
        %628 = vmatpush.msra.mxu0 %v372
        %629 = vmatpush.msra.mxu0 %v371
        %630 = vmatpush.msra.mxu0 %v370
        %631 = vmatmul.f32.gmra.mxu0 %v593
        %v632 = vpop.f32.mrf.mxu0
        %v633 = vadd.f32 0.0, %v632
        %634 = vdwg.mxu0
        %635 = vmatpush.msra.mxu0 0.0
        %636 = vmatpush.msra.mxu0 0.0
        %637 = vmatpush.msra.mxu0 0.0
        %638 = vmatpush.msra.mxu0 0.0
        %639 = vmatpush.msra.mxu0 0.0
        %640 = vmatpush.msra.mxu0 0.0
        %641 = vmatpush.msra.mxu0 0.0
        %642 = vmatpush.msra.mxu0 0.0
        %643 = vmatpush.msra.mxu0 0.0
        %644 = vmatpush.msra.mxu0 0.0
        %645 = vmatpush.msra.mxu0 0.0
        %646 = vmatpush.msra.mxu0 0.0
        %647 = vmatpush.msra.mxu0 %v378
        %648 = vmatpush.msra.mxu0 %v377
        %649 = vmatpush.msra.mxu0 %v376
        %650 = vmatpush.msra.mxu0 %v375
        %651 = vmatmul.f32.gmra.mxu0 %v593
        %v652 = vpop.f32.mrf.mxu0
        %v653 = vadd.f32 0.0, %v652
        %654 = vdwg.mxu0
        %v655 = vadd.f32 %v544, %v613
        %v656 = vadd.f32 %v655, %v349
        %v657 = vxor.u32 %v656, 2147483648
        %v658 = vmul.f32 %v657, 1.442695
        %v659 = vpow.pop %v658
        %v660 = vadd.f32 %v659, 1.0
        %v661 = vrcp.pop %v660
        %v662 = vmul.f32 %v660, %v661
        %v663 = vsub.f32 1.0, %v662
        %v664 = vmul.f32 %v661, %v663
        %v665 = vadd.f32 %v661, %v664
        %vm666 = vweird.f32 %v660
        %vm667 = vweird.f32 %v661
        %vm668 = vmor %vm666, %vm667
        %v669 = vsel %vm668, %v661, %v665
        %v670 = vand.u32 2147483647, %v660
        %vm671 = vcmp.eq.f32.partialorder %v670, 8.507059e+37
        %v672 = vand.u32 %v660, 2147483648
        %v673 = vor.u32 1.1754944e-38, %v672
        %v674 = vsel %vm671, %v673, %v669
        %v675 = vmul.f32 1.0, %v674
        %v676 = vadd.f32 %v567, %v633
        %v677 = vxor.u32 %v676, 2147483648
        %v678 = vmul.f32 %v677, 1.442695
        %v679 = vpow.pop %v678
        %v680 = vadd.f32 %v679, 1.0
        %v681 = vrcp.pop %v680
        %v682 = vmul.f32 %v680, %v681
        %v683 = vsub.f32 1.0, %v682
        %v684 = vmul.f32 %v681, %v683
        %v685 = vadd.f32 %v681, %v684
        %vm686 = vweird.f32 %v680
        %vm687 = vweird.f32 %v681
        %vm688 = vmor %vm686, %vm687
        %v689 = vsel %vm688, %v681, %v685
        %v690 = vand.u32 2147483647, %v680
        %vm691 = vcmp.eq.f32.partialorder %v690, 8.507059e+37
        %v692 = vand.u32 %v680, 2147483648
        %v693 = vor.u32 1.1754944e-38, %v692
        %v694 = vsel %vm691, %v693, %v689
        %v695 = vmul.f32 1.0, %v694
        %v696 = vmul.f32 %v675, %v653
        %v697 = vadd.f32 %v590, %v696
        %v698 = vtanh.pop %v697
        %v699 = vsub.f32 1.0, %v695
        %v700 = vmul.f32 %v699, %v698
        %v701 = vmul.f32 %v695, %v402
        %v702 = vadd.f32 %v700, %v701
        %703 = vst.msk [vmem:[%s335] sm:$0xff] %vm408, %v702
        %s704 = scalar_lea.vmem %s288, 24 [#allocation3]
        %v705 = vld [vmem:[%s704] sm:$0xff]
        %s706 = scalar_lea.vmem %s288, 32 [#allocation3]
        %v707 = vld [vmem:[%s706] sm:$0xff]
        %s708 = scalar_lea.vmem %s288, 40 [#allocation3]
        %v709 = vld [vmem:[%s708] sm:$0xff]
        %710 = vmatpush.msra.mxu0 0.0
        %711 = vmatpush.msra.mxu0 0.0
        %712 = vmatpush.msra.mxu0 0.0
        %713 = vmatpush.msra.mxu0 0.0
        %714 = vmatpush.msra.mxu0 0.0
        %715 = vmatpush.msra.mxu0 0.0
        %716 = vmatpush.msra.mxu0 0.0
        %717 = vmatpush.msra.mxu0 0.0
        %718 = vmatpush.msra.mxu0 0.0
        %719 = vmatpush.msra.mxu0 0.0
        %720 = vmatpush.msra.mxu0 0.0
        %721 = vmatpush.msra.mxu0 0.0
        %722 = vmatpush.msra.mxu0 %v353
        %723 = vmatpush.msra.mxu0 %v352
        %724 = vmatpush.msra.mxu0 %v351
        %725 = vmatpush.msra.mxu0 %v350
        %726 = vmatmul.f32.gmra.mxu0 %v524
        %v727 = vpop.f32.mrf.mxu0
        %v728 = vadd.f32 0.0, %v727
        %729 = vdwg.mxu0
        %730 = vmatpush.msra.mxu0 0.0
        %731 = vmatpush.msra.mxu0 0.0
        %732 = vmatpush.msra.mxu0 0.0
        %733 = vmatpush.msra.mxu0 0.0
        %734 = vmatpush.msra.mxu0 0.0
        %735 = vmatpush.msra.mxu0 0.0
        %736 = vmatpush.msra.mxu0 0.0
        %737 = vmatpush.msra.mxu0 0.0
        %738 = vmatpush.msra.mxu0 0.0
        %739 = vmatpush.msra.mxu0 0.0
        %740 = vmatpush.msra.mxu0 0.0
        %741 = vmatpush.msra.mxu0 0.0
        %742 = vmatpush.msra.mxu0 %v358
        %743 = vmatpush.msra.mxu0 %v357
        %744 = vmatpush.msra.mxu0 %v356
        %745 = vmatpush.msra.mxu0 %v355
        %746 = vmatmul.f32.gmra.mxu0 %v524
        %v747 = vpop.f32.mrf.mxu0
        %v748 = vadd.f32 0.0, %v747
        %749 = vdwg.mxu0
        %750 = vmatpush.msra.mxu0 0.0
        %751 = vmatpush.msra.mxu0 0.0
        %752 = vmatpush.msra.mxu0 0.0
        %753 = vmatpush.msra.mxu0 0.0
        %754 = vmatpush.msra.mxu0 0.0
        %755 = vmatpush.msra.mxu0 0.0
        %756 = vmatpush.msra.mxu0 0.0
        %757 = vmatpush.msra.mxu0 0.0
        %758 = vmatpush.msra.mxu0 0.0
        %759 = vmatpush.msra.mxu0 0.0
        %760 = vmatpush.msra.mxu0 0.0
        %761 = vmatpush.msra.mxu0 0.0
        %762 = vmatpush.msra.mxu0 %v363
        %763 = vmatpush.msra.mxu0 %v362
        %764 = vmatpush.msra.mxu0 %v361
        %765 = vmatpush.msra.mxu0 %v360
        %766 = vmatmul.f32.gmra.mxu0 %v524
        %v767 = vpop.f32.mrf.mxu0
        %v768 = vadd.f32 0.0, %v767
        %769 = vdwg.mxu0
        %v770 = vadd.f32 %v705, %v728
        %v771 = vadd.f32 %v770, %v347
        %v772 = vxor.u32 %v771, 2147483648
        %v773 = vmul.f32 %v772, 1.442695
        %v774 = vpow.pop %v773
        %v775 = vadd.f32 %v774, 1.0
        %v776 = vrcp.pop %v775
        %v777 = vmul.f32 %v775, %v776
        %v778 = vsub.f32 1.0, %v777
        %v779 = vmul.f32 %v776, %v778
        %v780 = vadd.f32 %v776, %v779
        %vm781 = vweird.f32 %v775
        %vm782 = vweird.f32 %v776
        %vm783 = vmor %vm781, %vm782
        %v784 = vsel %vm783, %v776, %v780
        %v785 = vand.u32 2147483647, %v775
        %vm786 = vcmp.eq.f32.partialorder %v785, 8.507059e+37
        %v787 = vand.u32 %v775, 2147483648
        %v788 = vor.u32 1.1754944e-38, %v787
        %v789 = vsel %vm786, %v788, %v784
        %v790 = vmul.f32 1.0, %v789
        %v791 = vadd.f32 %v707, %v748
        %v792 = vxor.u32 %v791, 2147483648
        %v793 = vmul.f32 %v792, 1.442695
        %v794 = vpow.pop %v793
        %v795 = vadd.f32 %v794, 1.0
        %v796 = vrcp.pop %v795
        %v797 = vmul.f32 %v795, %v796
        %v798 = vsub.f32 1.0, %v797
        %v799 = vmul.f32 %v796, %v798
        %v800 = vadd.f32 %v796, %v799
        %vm801 = vweird.f32 %v795
        %vm802 = vweird.f32 %v796
        %vm803 = vmor %vm801, %vm802
        %v804 = vsel %vm803, %v796, %v800
        %v805 = vand.u32 2147483647, %v795
        %vm806 = vcmp.eq.f32.partialorder %v805, 8.507059e+37
        %v807 = vand.u32 %v795, 2147483648
        %v808 = vor.u32 1.1754944e-38, %v807
        %v809 = vsel %vm806, %v808, %v804
        %v810 = vmul.f32 1.0, %v809
        %v811 = vmul.f32 %v790, %v768
        %v812 = vadd.f32 %v709, %v811
        %v813 = vtanh.pop %v812
        %v814 = vsub.f32 1.0, %v810
        %v815 = vmul.f32 %v814, %v813
        %v816 = vmul.f32 %v810, %v519
        %v817 = vadd.f32 %v815, %v816
        %v819 = vsel %vm408, %v817, 0
        %821 = vmatpush.msra.mxu0 0.0
        %822 = vmatpush.msra.mxu0 0.0
        %823 = vmatpush.msra.mxu0 0.0
        %824 = vmatpush.msra.mxu0 0.0
        %825 = vmatpush.msra.mxu0 0.0
        %826 = vmatpush.msra.mxu0 0.0
        %827 = vmatpush.msra.mxu0 0.0
        %828 = vmatpush.msra.mxu0 0.0
        %829 = vmatpush.msra.mxu0 0.0
        %830 = vmatpush.msra.mxu0 0.0
        %831 = vmatpush.msra.mxu0 0.0
        %832 = vmatpush.msra.mxu0 0.0
        %833 = vmatpush.msra.mxu0 %v383
        %834 = vmatpush.msra.mxu0 %v382
        %835 = vmatpush.msra.mxu0 %v381
        %836 = vmatpush.msra.mxu0 %v380
        %837 = vmatmul.f32.gmra.mxu0 %v819
        %v838 = vpop.f32.mrf.mxu0
        %v839 = vadd.f32 %v521, %v838
        %840 = vdwg.mxu0
        %841 = vmatpush.msra.mxu0 0.0
        %842 = vmatpush.msra.mxu0 0.0
        %843 = vmatpush.msra.mxu0 0.0
        %844 = vmatpush.msra.mxu0 0.0
        %845 = vmatpush.msra.mxu0 0.0
        %846 = vmatpush.msra.mxu0 0.0
        %847 = vmatpush.msra.mxu0 0.0
        %848 = vmatpush.msra.mxu0 0.0
        %849 = vmatpush.msra.mxu0 0.0
        %850 = vmatpush.msra.mxu0 0.0
        %851 = vmatpush.msra.mxu0 0.0
        %852 = vmatpush.msra.mxu0 0.0
        %853 = vmatpush.msra.mxu0 %v388
        %854 = vmatpush.msra.mxu0 %v387
        %855 = vmatpush.msra.mxu0 %v386
        %856 = vmatpush.msra.mxu0 %v385
        %857 = vmatmul.f32.gmra.mxu0 %v819
        %v858 = vpop.f32.mrf.mxu0
        %v859 = vadd.f32 %v547, %v858
        %860 = vdwg.mxu0
        %861 = vmatpush.msra.mxu0 0.0
        %862 = vmatpush.msra.mxu0 0.0
        %863 = vmatpush.msra.mxu0 0.0
        %864 = vmatpush.msra.mxu0 0.0
        %865 = vmatpush.msra.mxu0 0.0
        %866 = vmatpush.msra.mxu0 0.0
        %867 = vmatpush.msra.mxu0 0.0
        %868 = vmatpush.msra.mxu0 0.0
        %869 = vmatpush.msra.mxu0 0.0
        %870 = vmatpush.msra.mxu0 0.0
        %871 = vmatpush.msra.mxu0 0.0
        %872 = vmatpush.msra.mxu0 0.0
        %873 = vmatpush.msra.mxu0 %v393
        %874 = vmatpush.msra.mxu0 %v392
        %875 = vmatpush.msra.mxu0 %v391
        %876 = vmatpush.msra.mxu0 %v390
        %877 = vmatmul.f32.gmra.mxu0 %v819
        %v878 = vpop.f32.mrf.mxu0
        %v879 = vadd.f32 %v570, %v878
        %880 = vdwg.mxu0
        %v882 = vsel %vm408, %v702, 0
        %884 = vmatpush.msra.mxu0 0.0
        %885 = vmatpush.msra.mxu0 0.0
        %886 = vmatpush.msra.mxu0 0.0
        %887 = vmatpush.msra.mxu0 0.0
        %888 = vmatpush.msra.mxu0 0.0
        %889 = vmatpush.msra.mxu0 0.0
        %890 = vmatpush.msra.mxu0 0.0
        %891 = vmatpush.msra.mxu0 0.0
        %892 = vmatpush.msra.mxu0 0.0
        %893 = vmatpush.msra.mxu0 0.0
        %894 = vmatpush.msra.mxu0 0.0
        %895 = vmatpush.msra.mxu0 0.0
        %896 = vmatpush.msra.mxu0 %v368
        %897 = vmatpush.msra.mxu0 %v367
        %898 = vmatpush.msra.mxu0 %v366
        %899 = vmatpush.msra.mxu0 %v365
        %900 = vmatmul.f32.gmra.mxu0 %v882
        %v901 = vpop.f32.mrf.mxu0
        %v902 = vadd.f32 0.0, %v901
        %903 = vdwg.mxu0
        %904 = vmatpush.msra.mxu0 0.0
        %905 = vmatpush.msra.mxu0 0.0
        %906 = vmatpush.msra.mxu0 0.0
        %907 = vmatpush.msra.mxu0 0.0
        %908 = vmatpush.msra.mxu0 0.0
        %909 = vmatpush.msra.mxu0 0.0
        %910 = vmatpush.msra.mxu0 0.0
        %911 = vmatpush.msra.mxu0 0.0
        %912 = vmatpush.msra.mxu0 0.0
        %913 = vmatpush.msra.mxu0 0.0
        %914 = vmatpush.msra.mxu0 0.0
        %915 = vmatpush.msra.mxu0 0.0
        %916 = vmatpush.msra.mxu0 %v373
        %917 = vmatpush.msra.mxu0 %v372
        %918 = vmatpush.msra.mxu0 %v371
        %919 = vmatpush.msra.mxu0 %v370
        %920 = vmatmul.f32.gmra.mxu0 %v882
        %v921 = vpop.f32.mrf.mxu0
        %v922 = vadd.f32 0.0, %v921
        %923 = vdwg.mxu0
        %924 = vmatpush.msra.mxu0 0.0
        %925 = vmatpush.msra.mxu0 0.0
        %926 = vmatpush.msra.mxu0 0.0
        %927 = vmatpush.msra.mxu0 0.0
        %928 = vmatpush.msra.mxu0 0.0
        %929 = vmatpush.msra.mxu0 0.0
        %930 = vmatpush.msra.mxu0 0.0
        %931 = vmatpush.msra.mxu0 0.0
        %932 = vmatpush.msra.mxu0 0.0
        %933 = vmatpush.msra.mxu0 0.0
        %934 = vmatpush.msra.mxu0 0.0
        %935 = vmatpush.msra.mxu0 0.0
        %936 = vmatpush.msra.mxu0 %v378
        %937 = vmatpush.msra.mxu0 %v377
        %938 = vmatpush.msra.mxu0 %v376
        %939 = vmatpush.msra.mxu0 %v375
        %940 = vmatmul.f32.gmra.mxu0 %v882
        %v941 = vpop.f32.mrf.mxu0
        %v942 = vadd.f32 0.0, %v941
        %943 = vdwg.mxu0
        %v944 = vadd.f32 %v839, %v902
        %v945 = vadd.f32 %v944, %v349
        %v946 = vxor.u32 %v945, 2147483648
        %v947 = vmul.f32 %v946, 1.442695
        %v948 = vpow.pop %v947
        %v949 = vadd.f32 %v948, 1.0
        %v950 = vrcp.pop %v949
        %v951 = vmul.f32 %v949, %v950
        %v952 = vsub.f32 1.0, %v951
        %v953 = vmul.f32 %v950, %v952
        %v954 = vadd.f32 %v950, %v953
        %vm955 = vweird.f32 %v949
        %vm956 = vweird.f32 %v950
        %vm957 = vmor %vm955, %vm956
        %v958 = vsel %vm957, %v950, %v954
        %v959 = vand.u32 2147483647, %v949
        %vm960 = vcmp.eq.f32.partialorder %v959, 8.507059e+37
        %v961 = vand.u32 %v949, 2147483648
        %v962 = vor.u32 1.1754944e-38, %v961
        %v963 = vsel %vm960, %v962, %v958
        %v964 = vmul.f32 1.0, %v963
        %v965 = vadd.f32 %v859, %v922
        %v966 = vxor.u32 %v965, 2147483648
        %v967 = vmul.f32 %v966, 1.442695
        %v968 = vpow.pop %v967
        %v969 = vadd.f32 %v968, 1.0
        %v970 = vrcp.pop %v969
        %v971 = vmul.f32 %v969, %v970
        %v972 = vsub.f32 1.0, %v971
        %v973 = vmul.f32 %v970, %v972
        %v974 = vadd.f32 %v970, %v973
        %vm975 = vweird.f32 %v969
        %vm976 = vweird.f32 %v970
        %vm977 = vmor %vm975, %vm976
        %v978 = vsel %vm977, %v970, %v974
        %v979 = vand.u32 2147483647, %v969
        %vm980 = vcmp.eq.f32.partialorder %v979, 8.507059e+37
        %v981 = vand.u32 %v969, 2147483648
        %v982 = vor.u32 1.1754944e-38, %v981
        %v983 = vsel %vm980, %v982, %v978
        %v984 = vmul.f32 1.0, %v983
        %v985 = vmul.f32 %v964, %v942
        %v986 = vadd.f32 %v879, %v985
        %v987 = vtanh.pop %v986
        %v988 = vsub.f32 1.0, %v984
        %v989 = vmul.f32 %v988, %v987
        %v990 = vmul.f32 %v984, %v702
        %v991 = vadd.f32 %v989, %v990
        %s992 = scalar_lea.vmem %s335, 8 [#allocation12]
        %993 = vst.msk [vmem:[%s992] sm:$0xff] %vm408, %v991
        %s994 = scalar_lea.vmem %s288, 48 [#allocation3]
        %v995 = vld [vmem:[%s994] sm:$0xff]
        %s996 = scalar_lea.vmem %s288, 56 [#allocation3]
        %v997 = vld [vmem:[%s996] sm:$0xff]
        %s998 = scalar_lea.vmem %s288, 64 [#allocation3]
        %v999 = vld [vmem:[%s998] sm:$0xff]
        %1000 = vmatpush.msra.mxu0 0.0
        %1001 = vmatpush.msra.mxu0 0.0
        %1002 = vmatpush.msra.mxu0 0.0
        %1003 = vmatpush.msra.mxu0 0.0
        %1004 = vmatpush.msra.mxu0 0.0
        %1005 = vmatpush.msra.mxu0 0.0
        %1006 = vmatpush.msra.mxu0 0.0
        %1007 = vmatpush.msra.mxu0 0.0
        %1008 = vmatpush.msra.mxu0 0.0
        %1009 = vmatpush.msra.mxu0 0.0
        %1010 = vmatpush.msra.mxu0 0.0
        %1011 = vmatpush.msra.mxu0 0.0
        %1012 = vmatpush.msra.mxu0 %v353
        %1013 = vmatpush.msra.mxu0 %v352
        %1014 = vmatpush.msra.mxu0 %v351
        %1015 = vmatpush.msra.mxu0 %v350
        %1016 = vmatmul.f32.gmra.mxu0 %v819
        %v1017 = vpop.f32.mrf.mxu0
        %v1018 = vadd.f32 0.0, %v1017
        %1019 = vdwg.mxu0
        %1020 = vmatpush.msra.mxu0 0.0
        %1021 = vmatpush.msra.mxu0 0.0
        %1022 = vmatpush.msra.mxu0 0.0
        %1023 = vmatpush.msra.mxu0 0.0
        %1024 = vmatpush.msra.mxu0 0.0
        %1025 = vmatpush.msra.mxu0 0.0
        %1026 = vmatpush.msra.mxu0 0.0
        %1027 = vmatpush.msra.mxu0 0.0
        %1028 = vmatpush.msra.mxu0 0.0
        %1029 = vmatpush.msra.mxu0 0.0
        %1030 = vmatpush.msra.mxu0 0.0
        %1031 = vmatpush.msra.mxu0 0.0
        %1032 = vmatpush.msra.mxu0 %v358
        %1033 = vmatpush.msra.mxu0 %v357
        %1034 = vmatpush.msra.mxu0 %v356
        %1035 = vmatpush.msra.mxu0 %v355
        %1036 = vmatmul.f32.gmra.mxu0 %v819
        %v1037 = vpop.f32.mrf.mxu0
        %v1038 = vadd.f32 0.0, %v1037
        %1039 = vdwg.mxu0
        %1040 = vmatpush.msra.mxu0 0.0
        %1041 = vmatpush.msra.mxu0 0.0
        %1042 = vmatpush.msra.mxu0 0.0
        %1043 = vmatpush.msra.mxu0 0.0
        %1044 = vmatpush.msra.mxu0 0.0
        %1045 = vmatpush.msra.mxu0 0.0
        %1046 = vmatpush.msra.mxu0 0.0
        %1047 = vmatpush.msra.mxu0 0.0
        %1048 = vmatpush.msra.mxu0 0.0
        %1049 = vmatpush.msra.mxu0 0.0
        %1050 = vmatpush.msra.mxu0 0.0
        %1051 = vmatpush.msra.mxu0 0.0
        %1052 = vmatpush.msra.mxu0 %v363
        %1053 = vmatpush.msra.mxu0 %v362
        %1054 = vmatpush.msra.mxu0 %v361
        %1055 = vmatpush.msra.mxu0 %v360
        %1056 = vmatmul.f32.gmra.mxu0 %v819
        %v1057 = vpop.f32.mrf.mxu0
        %v1058 = vadd.f32 0.0, %v1057
        %1059 = vdwg.mxu0
        %v1060 = vadd.f32 %v995, %v1018
        %v1061 = vadd.f32 %v1060, %v347
        %v1062 = vxor.u32 %v1061, 2147483648
        %v1063 = vmul.f32 %v1062, 1.442695
        %v1064 = vpow.pop %v1063
        %v1065 = vadd.f32 %v1064, 1.0
        %v1066 = vrcp.pop %v1065
        %v1067 = vmul.f32 %v1065, %v1066
        %v1068 = vsub.f32 1.0, %v1067
        %v1069 = vmul.f32 %v1066, %v1068
        %v1070 = vadd.f32 %v1066, %v1069
        %vm1071 = vweird.f32 %v1065
        %vm1072 = vweird.f32 %v1066
        %vm1073 = vmor %vm1071, %vm1072
        %v1074 = vsel %vm1073, %v1066, %v1070
        %v1075 = vand.u32 2147483647, %v1065
        %vm1076 = vcmp.eq.f32.partialorder %v1075, 8.507059e+37
        %v1077 = vand.u32 %v1065, 2147483648
        %v1078 = vor.u32 1.1754944e-38, %v1077
        %v1079 = vsel %vm1076, %v1078, %v1074
        %v1080 = vmul.f32 1.0, %v1079
        %v1081 = vadd.f32 %v997, %v1038
        %v1082 = vxor.u32 %v1081, 2147483648
        %v1083 = vmul.f32 %v1082, 1.442695
        %v1084 = vpow.pop %v1083
        %v1085 = vadd.f32 %v1084, 1.0
        %v1086 = vrcp.pop %v1085
        %v1087 = vmul.f32 %v1085, %v1086
        %v1088 = vsub.f32 1.0, %v1087
        %v1089 = vmul.f32 %v1086, %v1088
        %v1090 = vadd.f32 %v1086, %v1089
        %vm1091 = vweird.f32 %v1085
        %vm1092 = vweird.f32 %v1086
        %vm1093 = vmor %vm1091, %vm1092
        %v1094 = vsel %vm1093, %v1086, %v1090
        %v1095 = vand.u32 2147483647, %v1085
        %vm1096 = vcmp.eq.f32.partialorder %v1095, 8.507059e+37
        %v1097 = vand.u32 %v1085, 2147483648
        %v1098 = vor.u32 1.1754944e-38, %v1097
        %v1099 = vsel %vm1096, %v1098, %v1094
        %v1100 = vmul.f32 1.0, %v1099
        %v1101 = vmul.f32 %v1080, %v1058
        %v1102 = vadd.f32 %v999, %v1101
        %v1103 = vtanh.pop %v1102
        %v1104 = vsub.f32 1.0, %v1100
        %v1105 = vmul.f32 %v1104, %v1103
        %v1106 = vmul.f32 %v1100, %v817
        %v1107 = vadd.f32 %v1105, %v1106
        %v1109 = vsel %vm408, %v1107, 0
        %1111 = vmatpush.msra.mxu0 0.0
        %1112 = vmatpush.msra.mxu0 0.0
        %1113 = vmatpush.msra.mxu0 0.0
        %1114 = vmatpush.msra.mxu0 0.0
        %1115 = vmatpush.msra.mxu0 0.0
        %1116 = vmatpush.msra.mxu0 0.0
        %1117 = vmatpush.msra.mxu0 0.0
        %1118 = vmatpush.msra.mxu0 0.0
        %1119 = vmatpush.msra.mxu0 0.0
        %1120 = vmatpush.msra.mxu0 0.0
        %1121 = vmatpush.msra.mxu0 0.0
        %1122 = vmatpush.msra.mxu0 0.0
        %1123 = vmatpush.msra.mxu0 %v383
        %1124 = vmatpush.msra.mxu0 %v382
        %1125 = vmatpush.msra.mxu0 %v381
        %1126 = vmatpush.msra.mxu0 %v380
        %1127 = vmatmul.f32.gmra.mxu0 %v1109
        %v1128 = vpop.f32.mrf.mxu0
        %v1129 = vadd.f32 %v521, %v1128
        %1130 = vdwg.mxu0
        %1131 = vmatpush.msra.mxu0 0.0
        %1132 = vmatpush.msra.mxu0 0.0
        %1133 = vmatpush.msra.mxu0 0.0
        %1134 = vmatpush.msra.mxu0 0.0
        %1135 = vmatpush.msra.mxu0 0.0
        %1136 = vmatpush.msra.mxu0 0.0
        %1137 = vmatpush.msra.mxu0 0.0
        %1138 = vmatpush.msra.mxu0 0.0
        %1139 = vmatpush.msra.mxu0 0.0
        %1140 = vmatpush.msra.mxu0 0.0
        %1141 = vmatpush.msra.mxu0 0.0
        %1142 = vmatpush.msra.mxu0 0.0
        %1143 = vmatpush.msra.mxu0 %v388
        %1144 = vmatpush.msra.mxu0 %v387
        %1145 = vmatpush.msra.mxu0 %v386
        %1146 = vmatpush.msra.mxu0 %v385
        %1147 = vmatmul.f32.gmra.mxu0 %v1109
        %v1148 = vpop.f32.mrf.mxu0
        %v1149 = vadd.f32 %v547, %v1148
        %1150 = vdwg.mxu0
        %1151 = vmatpush.msra.mxu0 0.0
        %1152 = vmatpush.msra.mxu0 0.0
        %1153 = vmatpush.msra.mxu0 0.0
        %1154 = vmatpush.msra.mxu0 0.0
        %1155 = vmatpush.msra.mxu0 0.0
        %1156 = vmatpush.msra.mxu0 0.0
        %1157 = vmatpush.msra.mxu0 0.0
        %1158 = vmatpush.msra.mxu0 0.0
        %1159 = vmatpush.msra.mxu0 0.0
        %1160 = vmatpush.msra.mxu0 0.0
        %1161 = vmatpush.msra.mxu0 0.0
        %1162 = vmatpush.msra.mxu0 0.0
        %1163 = vmatpush.msra.mxu0 %v393
        %1164 = vmatpush.msra.mxu0 %v392
        %1165 = vmatpush.msra.mxu0 %v391
        %1166 = vmatpush.msra.mxu0 %v390
        %1167 = vmatmul.f32.gmra.mxu0 %v1109
        %v1168 = vpop.f32.mrf.mxu0
        %v1169 = vadd.f32 %v570, %v1168
        %1170 = vdwg.mxu0
        %v1172 = vsel %vm408, %v991, 0
        %1174 = vmatpush.msra.mxu0 0.0
        %1175 = vmatpush.msra.mxu0 0.0
        %1176 = vmatpush.msra.mxu0 0.0
        %1177 = vmatpush.msra.mxu0 0.0
        %1178 = vmatpush.msra.mxu0 0.0
        %1179 = vmatpush.msra.mxu0 0.0
        %1180 = vmatpush.msra.mxu0 0.0
        %1181 = vmatpush.msra.mxu0 0.0
        %1182 = vmatpush.msra.mxu0 0.0
        %1183 = vmatpush.msra.mxu0 0.0
        %1184 = vmatpush.msra.mxu0 0.0
        %1185 = vmatpush.msra.mxu0 0.0
        %1186 = vmatpush.msra.mxu0 %v368
        %1187 = vmatpush.msra.mxu0 %v367
        %1188 = vmatpush.msra.mxu0 %v366
        %1189 = vmatpush.msra.mxu0 %v365
        %1190 = vmatmul.f32.gmra.mxu0 %v1172
        %v1191 = vpop.f32.mrf.mxu0
        %v1192 = vadd.f32 0.0, %v1191
        %1193 = vdwg.mxu0
        %1194 = vmatpush.msra.mxu0 0.0
        %1195 = vmatpush.msra.mxu0 0.0
        %1196 = vmatpush.msra.mxu0 0.0
        %1197 = vmatpush.msra.mxu0 0.0
        %1198 = vmatpush.msra.mxu0 0.0
        %1199 = vmatpush.msra.mxu0 0.0
        %1200 = vmatpush.msra.mxu0 0.0
        %1201 = vmatpush.msra.mxu0 0.0
        %1202 = vmatpush.msra.mxu0 0.0
        %1203 = vmatpush.msra.mxu0 0.0
        %1204 = vmatpush.msra.mxu0 0.0
        %1205 = vmatpush.msra.mxu0 0.0
        %1206 = vmatpush.msra.mxu0 %v373
        %1207 = vmatpush.msra.mxu0 %v372
        %1208 = vmatpush.msra.mxu0 %v371
        %1209 = vmatpush.msra.mxu0 %v370
        %1210 = vmatmul.f32.gmra.mxu0 %v1172
        %v1211 = vpop.f32.mrf.mxu0
        %v1212 = vadd.f32 0.0, %v1211
        %1213 = vdwg.mxu0
        %1214 = vmatpush.msra.mxu0 0.0
        %1215 = vmatpush.msra.mxu0 0.0
        %1216 = vmatpush.msra.mxu0 0.0
        %1217 = vmatpush.msra.mxu0 0.0
        %1218 = vmatpush.msra.mxu0 0.0
        %1219 = vmatpush.msra.mxu0 0.0
        %1220 = vmatpush.msra.mxu0 0.0
        %1221 = vmatpush.msra.mxu0 0.0
        %1222 = vmatpush.msra.mxu0 0.0
        %1223 = vmatpush.msra.mxu0 0.0
        %1224 = vmatpush.msra.mxu0 0.0
        %1225 = vmatpush.msra.mxu0 0.0
        %1226 = vmatpush.msra.mxu0 %v378
        %1227 = vmatpush.msra.mxu0 %v377
        %1228 = vmatpush.msra.mxu0 %v376
        %1229 = vmatpush.msra.mxu0 %v375
        %1230 = vmatmul.f32.gmra.mxu0 %v1172
        %v1231 = vpop.f32.mrf.mxu0
        %v1232 = vadd.f32 0.0, %v1231
        %1233 = vdwg.mxu0
        %v1234 = vadd.f32 %v1129, %v1192
        %v1235 = vadd.f32 %v1234, %v349
        %v1236 = vxor.u32 %v1235, 2147483648
        %v1237 = vmul.f32 %v1236, 1.442695
        %v1238 = vpow.pop %v1237
        %v1239 = vadd.f32 %v1238, 1.0
        %v1240 = vrcp.pop %v1239
        %v1241 = vmul.f32 %v1239, %v1240
        %v1242 = vsub.f32 1.0, %v1241
        %v1243 = vmul.f32 %v1240, %v1242
        %v1244 = vadd.f32 %v1240, %v1243
        %vm1245 = vweird.f32 %v1239
        %vm1246 = vweird.f32 %v1240
        %vm1247 = vmor %vm1245, %vm1246
        %v1248 = vsel %vm1247, %v1240, %v1244
        %v1249 = vand.u32 2147483647, %v1239
        %vm1250 = vcmp.eq.f32.partialorder %v1249, 8.507059e+37
        %v1251 = vand.u32 %v1239, 2147483648
        %v1252 = vor.u32 1.1754944e-38, %v1251
        %v1253 = vsel %vm1250, %v1252, %v1248
        %v1254 = vmul.f32 1.0, %v1253
        %v1255 = vadd.f32 %v1149, %v1212
        %v1256 = vxor.u32 %v1255, 2147483648
        %v1257 = vmul.f32 %v1256, 1.442695
        %v1258 = vpow.pop %v1257
        %v1259 = vadd.f32 %v1258, 1.0
        %v1260 = vrcp.pop %v1259
        %v1261 = vmul.f32 %v1259, %v1260
        %v1262 = vsub.f32 1.0, %v1261
        %v1263 = vmul.f32 %v1260, %v1262
        %v1264 = vadd.f32 %v1260, %v1263
        %vm1265 = vweird.f32 %v1259
        %vm1266 = vweird.f32 %v1260
        %vm1267 = vmor %vm1265, %vm1266
        %v1268 = vsel %vm1267, %v1260, %v1264
        %v1269 = vand.u32 2147483647, %v1259
        %vm1270 = vcmp.eq.f32.partialorder %v1269, 8.507059e+37
        %v1271 = vand.u32 %v1259, 2147483648
        %v1272 = vor.u32 1.1754944e-38, %v1271
        %v1273 = vsel %vm1270, %v1272, %v1268
        %v1274 = vmul.f32 1.0, %v1273
        %v1275 = vmul.f32 %v1254, %v1232
        %v1276 = vadd.f32 %v1169, %v1275
        %v1277 = vtanh.pop %v1276
        %v1278 = vsub.f32 1.0, %v1274
        %v1279 = vmul.f32 %v1278, %v1277
        %v1280 = vmul.f32 %v1274, %v991
        %v1281 = vadd.f32 %v1279, %v1280
        %s1282 = scalar_lea.vmem %s335, 16 [#allocation12]
        %1283 = vst.msk [vmem:[%s1282] sm:$0xff] %vm408, %v1281
        %s1284 = scalar_lea.vmem %s288, 72 [#allocation3]
        %v1285 = vld [vmem:[%s1284] sm:$0xff]
        %s1286 = scalar_lea.vmem %s288, 80 [#allocation3]
        %v1287 = vld [vmem:[%s1286] sm:$0xff]
        %s1288 = scalar_lea.vmem %s288, 88 [#allocation3]
        %v1289 = vld [vmem:[%s1288] sm:$0xff]
        %1290 = vmatpush.msra.mxu0 0.0
        %1291 = vmatpush.msra.mxu0 0.0
        %1292 = vmatpush.msra.mxu0 0.0
        %1293 = vmatpush.msra.mxu0 0.0
        %1294 = vmatpush.msra.mxu0 0.0
        %1295 = vmatpush.msra.mxu0 0.0
        %1296 = vmatpush.msra.mxu0 0.0
        %1297 = vmatpush.msra.mxu0 0.0
        %1298 = vmatpush.msra.mxu0 0.0
        %1299 = vmatpush.msra.mxu0 0.0
        %1300 = vmatpush.msra.mxu0 0.0
        %1301 = vmatpush.msra.mxu0 0.0
        %1302 = vmatpush.msra.mxu0 %v353
        %1303 = vmatpush.msra.mxu0 %v352
        %1304 = vmatpush.msra.mxu0 %v351
        %1305 = vmatpush.msra.mxu0 %v350
        %1306 = vmatmul.f32.gmra.mxu0 %v1109
        %v1307 = vpop.f32.mrf.mxu0
        %v1308 = vadd.f32 0.0, %v1307
        %1309 = vdwg.mxu0
        %1310 = vmatpush.msra.mxu0 0.0
        %1311 = vmatpush.msra.mxu0 0.0
        %1312 = vmatpush.msra.mxu0 0.0
        %1313 = vmatpush.msra.mxu0 0.0
        %1314 = vmatpush.msra.mxu0 0.0
        %1315 = vmatpush.msra.mxu0 0.0
        %1316 = vmatpush.msra.mxu0 0.0
        %1317 = vmatpush.msra.mxu0 0.0
        %1318 = vmatpush.msra.mxu0 0.0
        %1319 = vmatpush.msra.mxu0 0.0
        %1320 = vmatpush.msra.mxu0 0.0
        %1321 = vmatpush.msra.mxu0 0.0
        %1322 = vmatpush.msra.mxu0 %v358
        %1323 = vmatpush.msra.mxu0 %v357
        %1324 = vmatpush.msra.mxu0 %v356
        %1325 = vmatpush.msra.mxu0 %v355
        %1326 = vmatmul.f32.gmra.mxu0 %v1109
        %v1327 = vpop.f32.mrf.mxu0
        %v1328 = vadd.f32 0.0, %v1327
        %1329 = vdwg.mxu0
        %1330 = vmatpush.msra.mxu0 0.0
        %1331 = vmatpush.msra.mxu0 0.0
        %1332 = vmatpush.msra.mxu0 0.0
        %1333 = vmatpush.msra.mxu0 0.0
        %1334 = vmatpush.msra.mxu0 0.0
        %1335 = vmatpush.msra.mxu0 0.0
        %1336 = vmatpush.msra.mxu0 0.0
        %1337 = vmatpush.msra.mxu0 0.0
        %1338 = vmatpush.msra.mxu0 0.0
        %1339 = vmatpush.msra.mxu0 0.0
        %1340 = vmatpush.msra.mxu0 0.0
        %1341 = vmatpush.msra.mxu0 0.0
        %1342 = vmatpush.msra.mxu0 %v363
        %1343 = vmatpush.msra.mxu0 %v362
        %1344 = vmatpush.msra.mxu0 %v361
        %1345 = vmatpush.msra.mxu0 %v360
        %1346 = vmatmul.f32.gmra.mxu0 %v1109
        %v1347 = vpop.f32.mrf.mxu0
        %v1348 = vadd.f32 0.0, %v1347
        %1349 = vdwg.mxu0
        %v1350 = vadd.f32 %v1285, %v1308
        %v1351 = vadd.f32 %v1350, %v347
        %v1352 = vxor.u32 %v1351, 2147483648
        %v1353 = vmul.f32 %v1352, 1.442695
        %v1354 = vpow.pop %v1353
        %v1355 = vadd.f32 %v1354, 1.0
        %v1356 = vrcp.pop %v1355
        %v1357 = vmul.f32 %v1355, %v1356
        %v1358 = vsub.f32 1.0, %v1357
        %v1359 = vmul.f32 %v1356, %v1358
        %v1360 = vadd.f32 %v1356, %v1359
        %vm1361 = vweird.f32 %v1355
        %vm1362 = vweird.f32 %v1356
        %vm1363 = vmor %vm1361, %vm1362
        %v1364 = vsel %vm1363, %v1356, %v1360
        %v1365 = vand.u32 2147483647, %v1355
        %vm1366 = vcmp.eq.f32.partialorder %v1365, 8.507059e+37
        %v1367 = vand.u32 %v1355, 2147483648
        %v1368 = vor.u32 1.1754944e-38, %v1367
        %v1369 = vsel %vm1366, %v1368, %v1364
        %v1370 = vmul.f32 1.0, %v1369
        %v1371 = vadd.f32 %v1287, %v1328
        %v1372 = vxor.u32 %v1371, 2147483648
        %v1373 = vmul.f32 %v1372, 1.442695
        %v1374 = vpow.pop %v1373
        %v1375 = vadd.f32 %v1374, 1.0
        %v1376 = vrcp.pop %v1375
        %v1377 = vmul.f32 %v1375, %v1376
        %v1378 = vsub.f32 1.0, %v1377
        %v1379 = vmul.f32 %v1376, %v1378
        %v1380 = vadd.f32 %v1376, %v1379
        %vm1381 = vweird.f32 %v1375
        %vm1382 = vweird.f32 %v1376
        %vm1383 = vmor %vm1381, %vm1382
        %v1384 = vsel %vm1383, %v1376, %v1380
        %v1385 = vand.u32 2147483647, %v1375
        %vm1386 = vcmp.eq.f32.partialorder %v1385, 8.507059e+37
        %v1387 = vand.u32 %v1375, 2147483648
        %v1388 = vor.u32 1.1754944e-38, %v1387
        %v1389 = vsel %vm1386, %v1388, %v1384
        %v1390 = vmul.f32 1.0, %v1389
        %v1391 = vmul.f32 %v1370, %v1348
        %v1392 = vadd.f32 %v1289, %v1391
        %v1393 = vtanh.pop %v1392
        %v1394 = vsub.f32 1.0, %v1390
        %v1395 = vmul.f32 %v1394, %v1393
        %v1396 = vmul.f32 %v1390, %v1107
        %v1397 = vadd.f32 %v1395, %v1396
        %v1399 = vsel %vm408, %v1397, 0
        %1401 = vmatpush.msra.mxu0 0.0
        %1402 = vmatpush.msra.mxu0 0.0
        %1403 = vmatpush.msra.mxu0 0.0
        %1404 = vmatpush.msra.mxu0 0.0
        %1405 = vmatpush.msra.mxu0 0.0
        %1406 = vmatpush.msra.mxu0 0.0
        %1407 = vmatpush.msra.mxu0 0.0
        %1408 = vmatpush.msra.mxu0 0.0
        %1409 = vmatpush.msra.mxu0 0.0
        %1410 = vmatpush.msra.mxu0 0.0
        %1411 = vmatpush.msra.mxu0 0.0
        %1412 = vmatpush.msra.mxu0 0.0
        %1413 = vmatpush.msra.mxu0 %v383
        %1414 = vmatpush.msra.mxu0 %v382
        %1415 = vmatpush.msra.mxu0 %v381
        %1416 = vmatpush.msra.mxu0 %v380
        %1417 = vmatmul.f32.gmra.mxu0 %v1399
        %v1418 = vpop.f32.mrf.mxu0
        %v1419 = vadd.f32 %v521, %v1418
        %1420 = vdwg.mxu0
        %1421 = vmatpush.msra.mxu0 0.0
        %1422 = vmatpush.msra.mxu0 0.0
        %1423 = vmatpush.msra.mxu0 0.0
        %1424 = vmatpush.msra.mxu0 0.0
        %1425 = vmatpush.msra.mxu0 0.0
        %1426 = vmatpush.msra.mxu0 0.0
        %1427 = vmatpush.msra.mxu0 0.0
        %1428 = vmatpush.msra.mxu0 0.0
        %1429 = vmatpush.msra.mxu0 0.0
        %1430 = vmatpush.msra.mxu0 0.0
        %1431 = vmatpush.msra.mxu0 0.0
        %1432 = vmatpush.msra.mxu0 0.0
        %1433 = vmatpush.msra.mxu0 %v388
        %1434 = vmatpush.msra.mxu0 %v387
        %1435 = vmatpush.msra.mxu0 %v386
        %1436 = vmatpush.msra.mxu0 %v385
        %1437 = vmatmul.f32.gmra.mxu0 %v1399
        %v1438 = vpop.f32.mrf.mxu0
        %v1439 = vadd.f32 %v547, %v1438
        %1440 = vdwg.mxu0
        %1441 = vmatpush.msra.mxu0 0.0
        %1442 = vmatpush.msra.mxu0 0.0
        %1443 = vmatpush.msra.mxu0 0.0
        %1444 = vmatpush.msra.mxu0 0.0
        %1445 = vmatpush.msra.mxu0 0.0
        %1446 = vmatpush.msra.mxu0 0.0
        %1447 = vmatpush.msra.mxu0 0.0
        %1448 = vmatpush.msra.mxu0 0.0
        %1449 = vmatpush.msra.mxu0 0.0
        %1450 = vmatpush.msra.mxu0 0.0
        %1451 = vmatpush.msra.mxu0 0.0
        %1452 = vmatpush.msra.mxu0 0.0
        %1453 = vmatpush.msra.mxu0 %v393
        %1454 = vmatpush.msra.mxu0 %v392
        %1455 = vmatpush.msra.mxu0 %v391
        %1456 = vmatpush.msra.mxu0 %v390
        %1457 = vmatmul.f32.gmra.mxu0 %v1399
        %v1458 = vpop.f32.mrf.mxu0
        %v1459 = vadd.f32 %v570, %v1458
        %1460 = vdwg.mxu0
        %v1462 = vsel %vm408, %v1281, 0
        %1464 = vmatpush.msra.mxu0 0.0
        %1465 = vmatpush.msra.mxu0 0.0
        %1466 = vmatpush.msra.mxu0 0.0
        %1467 = vmatpush.msra.mxu0 0.0
        %1468 = vmatpush.msra.mxu0 0.0
        %1469 = vmatpush.msra.mxu0 0.0
        %1470 = vmatpush.msra.mxu0 0.0
        %1471 = vmatpush.msra.mxu0 0.0
        %1472 = vmatpush.msra.mxu0 0.0
        %1473 = vmatpush.msra.mxu0 0.0
        %1474 = vmatpush.msra.mxu0 0.0
        %1475 = vmatpush.msra.mxu0 0.0
        %1476 = vmatpush.msra.mxu0 %v368
        %1477 = vmatpush.msra.mxu0 %v367
        %1478 = vmatpush.msra.mxu0 %v366
        %1479 = vmatpush.msra.mxu0 %v365
        %1480 = vmatmul.f32.gmra.mxu0 %v1462
        %v1481 = vpop.f32.mrf.mxu0
        %v1482 = vadd.f32 0.0, %v1481
        %1483 = vdwg.mxu0
        %1484 = vmatpush.msra.mxu0 0.0
        %1485 = vmatpush.msra.mxu0 0.0
        %1486 = vmatpush.msra.mxu0 0.0
        %1487 = vmatpush.msra.mxu0 0.0
        %1488 = vmatpush.msra.mxu0 0.0
        %1489 = vmatpush.msra.mxu0 0.0
        %1490 = vmatpush.msra.mxu0 0.0
        %1491 = vmatpush.msra.mxu0 0.0
        %1492 = vmatpush.msra.mxu0 0.0
        %1493 = vmatpush.msra.mxu0 0.0
        %1494 = vmatpush.msra.mxu0 0.0
        %1495 = vmatpush.msra.mxu0 0.0
        %1496 = vmatpush.msra.mxu0 %v373
        %1497 = vmatpush.msra.mxu0 %v372
        %1498 = vmatpush.msra.mxu0 %v371
        %1499 = vmatpush.msra.mxu0 %v370
        %1500 = vmatmul.f32.gmra.mxu0 %v1462
        %v1501 = vpop.f32.mrf.mxu0
        %v1502 = vadd.f32 0.0, %v1501
        %1503 = vdwg.mxu0
        %1504 = vmatpush.msra.mxu0 0.0
        %1505 = vmatpush.msra.mxu0 0.0
        %1506 = vmatpush.msra.mxu0 0.0
        %1507 = vmatpush.msra.mxu0 0.0
        %1508 = vmatpush.msra.mxu0 0.0
        %1509 = vmatpush.msra.mxu0 0.0
        %1510 = vmatpush.msra.mxu0 0.0
        %1511 = vmatpush.msra.mxu0 0.0
        %1512 = vmatpush.msra.mxu0 0.0
        %1513 = vmatpush.msra.mxu0 0.0
        %1514 = vmatpush.msra.mxu0 0.0
        %1515 = vmatpush.msra.mxu0 0.0
        %1516 = vmatpush.msra.mxu0 %v378
        %1517 = vmatpush.msra.mxu0 %v377
        %1518 = vmatpush.msra.mxu0 %v376
        %1519 = vmatpush.msra.mxu0 %v375
        %1520 = vmatmul.f32.gmra.mxu0 %v1462
        %v1521 = vpop.f32.mrf.mxu0
        %v1522 = vadd.f32 0.0, %v1521
        %1523 = vdwg.mxu0
        %v1524 = vadd.f32 %v1419, %v1482
        %v1525 = vadd.f32 %v1524, %v349
        %v1526 = vxor.u32 %v1525, 2147483648
        %v1527 = vmul.f32 %v1526, 1.442695
        %v1528 = vpow.pop %v1527
        %v1529 = vadd.f32 %v1528, 1.0
        %v1530 = vrcp.pop %v1529
        %v1531 = vmul.f32 %v1529, %v1530
        %v1532 = vsub.f32 1.0, %v1531
        %v1533 = vmul.f32 %v1530, %v1532
        %v1534 = vadd.f32 %v1530, %v1533
        %vm1535 = vweird.f32 %v1529
        %vm1536 = vweird.f32 %v1530
        %vm1537 = vmor %vm1535, %vm1536
        %v1538 = vsel %vm1537, %v1530, %v1534
        %v1539 = vand.u32 2147483647, %v1529
        %vm1540 = vcmp.eq.f32.partialorder %v1539, 8.507059e+37
        %v1541 = vand.u32 %v1529, 2147483648
        %v1542 = vor.u32 1.1754944e-38, %v1541
        %v1543 = vsel %vm1540, %v1542, %v1538
        %v1544 = vmul.f32 1.0, %v1543
        %v1545 = vadd.f32 %v1439, %v1502
        %v1546 = vxor.u32 %v1545, 2147483648
        %v1547 = vmul.f32 %v1546, 1.442695
        %v1548 = vpow.pop %v1547
        %v1549 = vadd.f32 %v1548, 1.0
        %v1550 = vrcp.pop %v1549
        %v1551 = vmul.f32 %v1549, %v1550
        %v1552 = vsub.f32 1.0, %v1551
        %v1553 = vmul.f32 %v1550, %v1552
        %v1554 = vadd.f32 %v1550, %v1553
        %vm1555 = vweird.f32 %v1549
        %vm1556 = vweird.f32 %v1550
        %vm1557 = vmor %vm1555, %vm1556
        %v1558 = vsel %vm1557, %v1550, %v1554
        %v1559 = vand.u32 2147483647, %v1549
        %vm1560 = vcmp.eq.f32.partialorder %v1559, 8.507059e+37
        %v1561 = vand.u32 %v1549, 2147483648
        %v1562 = vor.u32 1.1754944e-38, %v1561
        %v1563 = vsel %vm1560, %v1562, %v1558
        %v1564 = vmul.f32 1.0, %v1563
        %v1565 = vmul.f32 %v1544, %v1522
        %v1566 = vadd.f32 %v1459, %v1565
        %v1567 = vtanh.pop %v1566
        %v1568 = vsub.f32 1.0, %v1564
        %v1569 = vmul.f32 %v1568, %v1567
        %v1570 = vmul.f32 %v1564, %v1281
        %v1571 = vadd.f32 %v1569, %v1570
        %s1572 = scalar_lea.vmem %s335, 24 [#allocation12]
        %1573 = vst.msk [vmem:[%s1572] sm:$0xff] %vm408, %v1571
        %1574 = vst.msk [vmem:[#allocation2] sm:$0xff] %vm408, %v1397
        %1575 = vst.msk [vmem:[%s401] sm:$0xff] %vm408, %v1571
        %p1576 = scmp.eq.s32.totalorder %s27, 1
        // Predicated region
        $region65: #{tpu_custom_call.1} parent=39 // pred_check
          %p1577 = pneg %p1576
        $region66: #{tpu_custom_call.1} parent=39 // pred_check_branch
          %1579 = sbr.rel (%p1577) target = $region68
        $region67: #{tpu_custom_call.1} parent=39 // pred_region
          %1580 = vst.msk [vmem:[#allocation13] sm:$0xff] %vm408, %v1397
          %s1581 = scalar_lea.vmem [#allocation13], 8
          %1582 = vst.msk [vmem:[%s1581] sm:$0xff] %vm408, %v1571
        $region68: #{tpu_custom_call.1} parent=39 // pred_fallthru
          _
        %s1583 = sand.u32 %s145, 1
        %s1584 = scalar_lea.sflag [#allocation5], %s1583
        %s1585 = sand.u32 %s145, 1
        %s1586 = smul.addr %s1585, 32
        %s1587 = scalar_lea.vmem [#allocation12], %s1586
        // Predicated region
        $region69: #{tpu_custom_call.1} parent=39 // pred_check
          %p1588 = pneg %p155
        $region70: #{tpu_custom_call.1} parent=39 // pred_check_branch
          %1590 = sbr.rel (%p1588) target = $region72
        $region71: #{tpu_custom_call.1} parent=39 // pred_region
          %s1591 = smul.u32 4, %s27
          %1593 = vsyncadd %s1584, 0
          %s1594 = smul.addr %s1591, 8
          %s1595 = scalar_lea.hbm %s5, %s1594
          %s1596 = sshll.u32 %s1587, 4
          %s1597 = int_to_ptr.vmem [resolvable:$true] %s1596
          %s1598 = sshll.u32 %s1595, 4
          %s1599 = int_to_ptr.hbm [resolvable:$true] %s1598
          %1604 = dma.vmem_to_hbm [thread:$0]  %s1597, 512, %s1599, %s1584, 128, 128, 8
        $region72: #{tpu_custom_call.1} parent=39 // pred_fallthru
          _
        // Predicated region
        $region73: #{tpu_custom_call.1} parent=39 // pred_check
          %p1605 = pneg %p176
        $region74: #{tpu_custom_call.1} parent=39 // pred_check_branch
          %1607 = sbr.rel (%p1605) target = $region76
        $region75: #{tpu_custom_call.1} parent=39 // pred_region
          %1609 = vsyncadd [#allocation14], 0
          %s1610 = sshll.u32 [#allocation13], 4
          %s1611 = int_to_ptr.vmem [resolvable:$true] %s1610
          %s1612 = sshll.u32 %s6, 4
          %s1613 = int_to_ptr.hbm [resolvable:$true] %s1612
          %1618 = dma.vmem_to_hbm [thread:$0]  %s1611, 256, %s1613, [#allocation14], 128, 128, 8
        $region76: #{tpu_custom_call.1} parent=39 // pred_fallthru
          _
        // Predicated region
        $region77: #{tpu_custom_call.1} parent=39 // pred_check
          %p1619 = pneg %p176
        $region78: #{tpu_custom_call.1} parent=39 // pred_check_branch
          %1621 = sbr.rel (%p1619) target = $region80
        $region79: #{tpu_custom_call.1} parent=39 // pred_region
          %1623 = dma.done [#allocation14], 256
        $region80: #{tpu_custom_call.1} parent=39 // pred_fallthru
          _
      $region40: #{tpu_custom_call.1} parent=5 // pred_fallthru
        _
      %p1624 = scmp.le.s32.totalorder 2, %s22
      // Predicated region
      $region81: #{tpu_custom_call.1} parent=5 // pred_check
        %p1625 = pneg %p1624
      $region82: #{tpu_custom_call.1} parent=5 // pred_check_branch
        %1627 = sbr.rel (%p1625) target = $region84
      $region83: #{tpu_custom_call.1} parent=5 // pred_region
        %s1628 = ssub.s32 %s22, 2
        // Predicated region
        $region85: #{tpu_custom_call.1} parent=83 // pred_check
          %p1629 = pneg %p161
        $region86: #{tpu_custom_call.1} parent=83 // pred_check_branch
          %1631 = sbr.rel (%p1629) target = $region88
        $region87: #{tpu_custom_call.1} parent=83 // pred_region
          %s1632 = sand.u32 %s146, 1
          %s1633 = scalar_lea.sflag [#allocation5], %s1632
          %s1634 = sand.u32 %s146, 1
          %s1635 = smul.addr %s1634, 32
          %s1636 = scalar_lea.vmem [#allocation12], %s1635
          %1638 = dma.done %s1633, 512
        $region88: #{tpu_custom_call.1} parent=83 // pred_fallthru
          _
      $region84: #{tpu_custom_call.1} parent=5 // pred_fallthru
        _
    $region6: #{tpu_custom_call.1} parent=1 // loop_footer
      %s26 = sadd.s32 1, %s22
    $region7: #{tpu_custom_call.1} parent=1 // loop_footer_branch
      %21 = sbr.rel target = $region3
    $region8: #{tpu_custom_call.1} parent=1 // loop_exit
      _
    %1639 = vsyncpa [#allocation4], 1
    %s1640 = scalar_lea.sflag [#allocation4], 1
    %1641 = vsyncpa %s1640, 1
    %1642 = vsyncpa [#allocation7], 1
    %1643 = vsyncpa [#allocation10], 1
    %1644 = vsyncpa [#allocation5], 1
    %s1645 = scalar_lea.sflag [#allocation5], 1
    %1646 = vsyncpa %s1645, 1
    %1647 = vsyncpa [#allocation14], 1

</llo_original>
